<compile_context>
chip_gen: v7x
topology: tpu7x:2x2x1
jax: 0.10.0
libtpu: 0.0.40
codegen_flags: <defaults>
</compile_context>

<pallas_src>
import functools

import jax
import jax.numpy as jnp
from jax.experimental import pallas as pl
from jax.experimental.pallas import tpu as pltpu

HIDDEN = 128          # hard-coded channel width in the module
NEG_SLOPE = 0.01      # nn.LeakyReLU default
BN_EPS = 1e-5


# ----------------------------------------------------------------------------
# Pallas kernel
# ----------------------------------------------------------------------------
def pitch_predictor_kernel(x_ref,             # (rows, Cpad)           f32
                           w1_ref, b1_ref,    # (3*Cpad, 128), (1,128)
                           ws_ref, bs_ref,    # (8, 384, 128), (8,1,128)
                           wh1_ref, bh1_ref,  # (384, 256), (1, 256)
                           w2_ref, b2_ref,    # (256, 2), (1, 2)
                           out_ref,           # (rows, 2)              f32
                           *, seq_len, block_b):
    x = x_ref[...]                            # (rows, Cpad) f32
    n_rows = x.shape[0]
    cdt = w1_ref.dtype                        # matmul compute dtype (bf16)

    # Row-only boundary masks (rows, 1), built ONCE per grid step and shared
    # by every k=3 conv layer; they broadcast across lanes inside jnp.where.
    tp = jax.lax.broadcasted_iota(jnp.int32, (seq_len, 1), 0)
    if block_b > 1:
        tp = jnp.concatenate([tp] * block_b, axis=0)        # (rows, 1)
    m_lo = tp >= 1               # row has a valid t-1 neighbour in its segment
    m_hi = tp < seq_len - 1      # row has a valid t+1 neighbour in its segment

    def leaky(y):                # == LeakyReLU(0.01): max(y, a*y) for a < 1
        return jnp.maximum(y, NEG_SLOPE * y)

    def conv3(h, w_flat, b):
        # Conv1d(k=3, pad=1) as ONE matmul: the three shifted copies of h are
        # concatenated along lanes so the MXU does the tap accumulation
        # (K = 3*C), f32 accumulate.  Rolls/masks stay f32 (see file header);
        # each tap is cast to the matmul dtype so the (rows, 3C) slab is only
        # ever materialised at bf16 width.
        h_m1 = jnp.where(m_lo, pltpu.roll(h, 1, axis=0), 0.0)            # h[t-1]
        h_p1 = jnp.where(m_hi, pltpu.roll(h, n_rows - 1, axis=0), 0.0)   # h[t+1]
        h_cat = jnp.concatenate(
            [h_m1.astype(cdt), h.astype(cdt), h_p1.astype(cdt)], axis=-1)
        return jnp.dot(h_cat, w_flat, preferred_element_type=jnp.float32) + b

    # cnn1 + LeakyReLU.
    h = leaky(conv3(x, w1_ref[...], b1_ref[...]))

    # cnn11..cnn17 and cnn2 (eval BatchNorm folded into its weights), each
    # followed by LeakyReLU: 8 stacked 128->128 layers as a fori_loop so live
    # ranges stay bounded (a fully unrolled 12-layer body drives vreg spills).
    def layer(i, h):
        return leaky(conv3(h, ws_ref[i], bs_ref[i]))
    h = jax.lax.fori_loop(0, ws_ref.shape[0], layer, h)

    # Both heads fused: one (rows,3C)@(3C,256) conv + LeakyReLU, then a single
    # (rows,256)@(256,2) 1x1 matmul.  Column 0 = classification, 1 = regression.
    hh = leaky(conv3(h, wh1_ref[...], bh1_ref[...]))
    out_ref[...] = (jnp.dot(hh.astype(cdt), w2_ref[...],
                            preferred_element_type=jnp.float32) + b2_ref[...])


def _pick_block_b(batch, seq_len, target_rows=1024, min_grid=2):
    """Pack several batch elements per grid step so the MXU M dimension is
    filled and the ~0.35 us/step grid overhead amortised, while keeping at
    least `min_grid` grid steps so a v7x megacore can shard the (parallel)
    grid axis across both TensorCores."""
    max_b = batch // min_grid if batch >= min_grid else batch
    max_b = max(max_b, 1)
    best = 1
    for cand in range(1, max_b + 1):
        if batch % cand == 0 and cand * seq_len <= max(target_rows, seq_len):
            best = cand
    return best


def pitch_predictor_pallas(xc, kernel_params, block_b=None):
    """xc: (B, T, 2*emb) float32 concatenated embeddings.  Returns (cls, reg),
    each (B, T), matching cnn_class2(...).squeeze(1) / cnn_reg2(...).squeeze(1)."""
    (w1, b1, ws, bs, wh1, bh1, w2, b2) = kernel_params
    B, T, c_in = xc.shape
    assert T % 8 == 0, "time axis must be a multiple of 8 (sublane tiling)"
    # TODO(synk): tile T (with a 1-row halo) inside the grid for very long
    # sequences so the live activation slab stays bounded on v7x's 64 MiB VMEM.

    c_pad = w1.shape[0] // 3          # input channels, lane-padded to 128 mult.
    if block_b is None:
        block_b = _pick_block_b(B, T)
    assert B % block_b == 0
    n_rows = block_b * T

    x2d = xc.reshape(B * T, c_in).astype(jnp.float32)
    if c_in < c_pad:                  # zero-pad lanes; matching weight rows are 0
        # TODO(synk): feed the (rows, 64) input unpadded (legal: block dim equals
        # the array dim) against a (192, 128) w1 -- minor, deferred for safety.
        x2d = jnp.pad(x2d, ((0, 0), (0, c_pad - c_in)))

    const = lambda a: pl.BlockSpec(a.shape, lambda g: (0,) * a.ndim)
    weights = (w1, b1, ws, bs, wh1, bh1, w2, b2)

    out2d = pl.pallas_call(
        functools.partial(pitch_predictor_kernel, seq_len=T, block_b=block_b),
        out_shape=jax.ShapeDtypeStruct((B * T, 2), jnp.float32),
        grid=(B // block_b,),
        in_specs=[pl.BlockSpec((n_rows, c_pad), lambda g: (g, 0))]
                + [const(a) for a in weights],
        out_specs=pl.BlockSpec((n_rows, 2), lambda g: (g, 0)),
        compiler_params=pltpu.CompilerParams(
            dimension_semantics=("parallel",),
            vmem_limit_bytes=32 * 1024 * 1024),
    )(x2d, *weights)

    out = out2d.reshape(B, T, 2)
    return out[..., 0], out[..., 1]


# ----------------------------------------------------------------------------
# Parameter construction (deterministic, synthetic) and JAX glue
# ----------------------------------------------------------------------------
def _conv_init(key, out_c, in_c, k):
    kw, kb = jax.random.split(key)
    std = 1.5 / (in_c * k) ** 0.5     # keeps activations O(1) through the stack
    w = std * jax.random.normal(kw, (out_c, in_c, k), jnp.float32)
    b = 0.02 * jax.random.normal(kb, (out_c,), jnp.float32)
    return w, b


def build_params(key, n_tokens, n_speakers, emb_size, max_len=850):
    keys = jax.random.split(key, 20)
    p = {}
    tok = 0.1 * jax.random.normal(keys[0], (n_tokens + 1, emb_size), jnp.float32)
    p["token_emb"] = tok.at[n_tokens].set(0.0)           # padding_idx row
    spk = 0.1 * jax.random.normal(keys[1], (n_speakers + 1, emb_size), jnp.float32)
    p["spk_emb"] = spk.at[n_speakers].set(0.0)
    # positional encoding table (ramp up / ramp down, as in the module)
    half = emb_size // 2
    pe_start = jnp.tile(jnp.linspace(0.0, 1.0, max_len)[:, None], (1, half))
    pe_end = jnp.tile(jnp.linspace(1.0, 0.0, max_len)[:, None], (1, half))
    p["pe"] = jnp.concatenate([pe_start, pe_end], axis=-1)   # (max_len, emb)
    # conv layers
    p["cnn1"] = _conv_init(keys[2], HIDDEN, 2 * emb_size, 3)
    for i, name in enumerate(["cnn11", "cnn12", "cnn13", "cnn14",
                              "cnn15", "cnn16", "cnn17", "cnn2"]):
        p[name] = _conv_init(keys[3 + i], HIDDEN, HIDDEN, 3)
    p["cnn_class1"] = _conv_init(keys[11], HIDDEN, HIDDEN, 3)
    p["cnn_class2"] = _conv_init(keys[12], 1, HIDDEN, 1)
    p["cnn_reg1"] = _conv_init(keys[13], HIDDEN, HIDDEN, 3)
    p["cnn_reg2"] = _conv_init(keys[14], 1, HIDDEN, 1)
    # BatchNorm1d(128) eval-mode parameters (deterministic, non-trivial)
    p["bn_gamma"] = 1.0 + 0.1 * jax.random.normal(keys[15], (HIDDEN,), jnp.float32)
    p["bn_beta"] = 0.1 * jax.random.normal(keys[16], (HIDDEN,), jnp.float32)
    p["bn_mean"] = 0.05 * jax.random.normal(keys[17], (HIDDEN,), jnp.float32)
    p["bn_var"] = 1.0 + 0.1 * jax.nn.softplus(
        jax.random.normal(keys[18], (HIDDEN,), jnp.float32))
    return p


def pack_kernel_params(p, dtype=jnp.bfloat16):
    """PyTorch (O, I, K) conv weights -> flattened tap-major (K*I, O) matmul
    weights.  Eval BatchNorm folded into cnn2; both heads stacked.  Matmul
    weights cast to `dtype` (bf16 on every TPU generation incl. v5e -- the MXU
    is natively bf16, f32 accumulate); biases / element-wise math stay f32."""
    def flat_taps(w, c_pad=None):
        o, i, k = w.shape
        wt = jnp.transpose(w, (2, 1, 0))              # (K, I, O), tap-major
        if c_pad is not None and c_pad > i:
            wt = jnp.pad(wt, ((0, 0), (0, c_pad - i), (0, 0)))
            i = c_pad
        return wt.reshape(k * i, o)

    w1, b1 = p["cnn1"]
    in_c = w1.shape[1]
    c_pad = ((in_c + 127) // 128) * 128

    # fold eval-mode BatchNorm into cnn2: y = (conv(x) - mean)/sqrt(var+eps)*g + b
    scale = p["bn_gamma"] / jnp.sqrt(p["bn_var"] + BN_EPS)
    w2c, b2c = p["cnn2"]
    w2f = w2c * scale[:, None, None]
    b2f = (b2c - p["bn_mean"]) * scale + p["bn_beta"]

    stack = ["cnn11", "cnn12", "cnn13", "cnn14", "cnn15", "cnn16", "cnn17"]
    ws = jnp.stack([flat_taps(p[n][0]) for n in stack] + [flat_taps(w2f)], 0)
    bs = jnp.stack([p[n][1] for n in stack] + [b2f], 0)[:, None, :]

    wc1, bc1 = p["cnn_class1"]
    wr1, br1 = p["cnn_reg1"]
    wc2, bc2 = p["cnn_class2"]
    wr2, br2 = p["cnn_reg2"]

    # fused heads: conv weights side-by-side, 1x1 weights block-diagonal
    wh1 = jnp.concatenate([flat_taps(wc1), flat_taps(wr1)], axis=1)   # (384, 256)
    bh1 = jnp.concatenate([bc1, br1])[None, :]                        # (1, 256)
    w2 = jnp.zeros((2 * HIDDEN, 2), jnp.float32)
    w2 = w2.at[:HIDDEN, 0].set(wc2[0, :, 0])
    w2 = w2.at[HIDDEN:, 1].set(wr2[0, :, 0])
    b2 = jnp.concatenate([bc2, br2])[None, :]                         # (1, 2)

    cast = lambda a: a.astype(dtype)
    return (cast(flat_taps(w1, c_pad)), b1[None, :],
            cast(ws), bs,
            cast(wh1), bh1,
            cast(w2), b2)


def embed_inputs(seq, spk_id, p):
    """Embedding lookups + positional encoding + concat (plain-JAX glue)."""
    B, T = seq.shape
    emb_seq = p["token_emb"][seq]                       # (B, T, emb)
    emb_spk = p["spk_emb"][spk_id[:, 0]][:, None, :]    # (B, 1, emb)
    emb_spk = jnp.repeat(emb_spk, T, axis=1) + p["pe"][:T][None]
    return jnp.concatenate([emb_seq, emb_spk], axis=-1).astype(jnp.float32)


# ----------------------------------------------------------------------------
# Pure-JAX reference (all-f32, HIGHEST matmul precision) for verification
# ----------------------------------------------------------------------------
def ref_forward(seq, spk_id, p):
    lk = lambda y: jnp.where(y > 0, y, NEG_SLOPE * y)
    hp = jax.lax.Precision.HIGHEST

    def conv(x, wb, pad):
        w, b = wb
        y = jax.lax.conv_general_dilated(
            x, w, window_strides=(1,), padding=((pad, pad),),
            dimension_numbers=("NCH", "OIH", "NCH"), precision=hp)
        return y + b[None, :, None]

    x = embed_inputs(seq, spk_id, p).transpose(0, 2, 1)  # (B, 2*emb, T)
    h = lk(conv(x, p["cnn1"], 1))
    for n in ["cnn11", "cnn12", "cnn13", "cnn14", "cnn15", "cnn16", "cnn17"]:
        h = lk(conv(h, p[n], 1))
    h2 = conv(h, p["cnn2"], 1)
    h2 = ((h2 - p["bn_mean"][None, :, None])
          / jnp.sqrt(p["bn_var"] + BN_EPS)[None, :, None]
          * p["bn_gamma"][None, :, None] + p["bn_beta"][None, :, None])
    h2 = lk(h2)
    hc = lk(conv(h2, p["cnn_class1"], 1))
    hr = lk(conv(h2, p["cnn_reg1"], 1))
    cls = conv(hc, p["cnn_class2"], 0)[:, 0, :]
    reg = conv(hr, p["cnn_reg2"], 0)[:, 0, :]
    return cls, reg


# ----------------------------------------------------------------------------
# Demo
# ----------------------------------------------------------------------------
if __name__ == "__main__":
    n_tokens, n_speakers, emb_size = 20, 6, 32
    B, T = 4, 16      # block_b=2, grid=2: exercises packed-segment masking
                      # and keeps >= 2 grid steps (v7x megacore sharding).

    key = jax.random.PRNGKey(0)
    k_par, k_seq, k_spk = jax.random.split(key, 3)

    params = build_params(k_par, n_tokens, n_speakers, emb_size)
    seq = jax.random.randint(k_seq, (B, T), 0, n_tokens, dtype=jnp.int32)
    spk_id = jax.random.randint(k_spk, (B, 1), 0, n_speakers, dtype=jnp.int32)
    xc = embed_inputs(seq, spk_id, params)              # (B, T, 2*emb)

    # Production path: bf16 matmul weights on every TPU generation
    # (f32 accumulate; biases and element-wise math in f32).
    kp = pack_kernel_params(params, dtype=jnp.bfloat16)
    run = jax.jit(functools.partial(pitch_predictor_pallas, kernel_params=kp))
    cls, reg = run(xc)
    jax.block_until_ready((cls, reg))

    cls_ref, reg_ref = ref_forward(seq, spk_id, params)
    assert cls.shape == (B, T) and reg.shape == (B, T)

    # bf16-weight kernel vs all-f32 (HIGHEST-precision) reference.  The bound
    # covers bf16 quantisation of every MXU matmul input across the 12-layer
    # stack; the values entering each matmul are identical to the previously
    # validated bf16 path (only the cast site moved ahead of the concat).
    assert jnp.allclose(cls, cls_ref, rtol=5e-2, atol=5e-2)
    assert jnp.allclose(reg, reg_ref, rtol=5e-2, atol=5e-2)

    print("KERNEL_OK")
</pallas_src>

<mosaic_0001>
module attributes {stable_mosaic.version = 11 : i64} {
  func.func @pitch_predictor_kernel(%arg0: i32, %arg1: memref<32x128xf32, #tpu.memory_space<vmem>>, %arg2: memref<384x128xbf16, #tpu.memory_space<vmem>>, %arg3: memref<1x128xf32, #tpu.memory_space<vmem>>, %arg4: memref<8x384x128xbf16, #tpu.memory_space<vmem>>, %arg5: memref<8x1x128xf32, #tpu.memory_space<vmem>>, %arg6: memref<384x256xbf16, #tpu.memory_space<vmem>>, %arg7: memref<1x256xf32, #tpu.memory_space<vmem>>, %arg8: memref<256x2xbf16, #tpu.memory_space<vmem>>, %arg9: memref<1x2xf32, #tpu.memory_space<vmem>>, %arg10: memref<32x2xf32, #tpu.memory_space<vmem>>) attributes {dimension_semantics = [#tpu.dimension_semantics<parallel>], iteration_bounds = array<i64: 2>, scalar_prefetch = 0 : i64, scratch_operands = 0 : i64, tpu.core_type = #tpu.core_type<tc>, window_params = [{transform_indices = @transform_0, window_bounds = array<i64: 32, 128>}, {pipeline_mode = #tpu.pipeline_mode<synchronous>, transform_indices = @transform_1, window_bounds = array<i64: 384, 128>}, {pipeline_mode = #tpu.pipeline_mode<synchronous>, transform_indices = @transform_2, window_bounds = array<i64: 1, 128>}, {pipeline_mode = #tpu.pipeline_mode<synchronous>, transform_indices = @transform_3, window_bounds = array<i64: 8, 384, 128>}, {pipeline_mode = #tpu.pipeline_mode<synchronous>, transform_indices = @transform_4, window_bounds = array<i64: 8, 1, 128>}, {pipeline_mode = #tpu.pipeline_mode<synchronous>, transform_indices = @transform_5, window_bounds = array<i64: 384, 256>}, {pipeline_mode = #tpu.pipeline_mode<synchronous>, transform_indices = @transform_6, window_bounds = array<i64: 1, 256>}, {pipeline_mode = #tpu.pipeline_mode<synchronous>, transform_indices = @transform_7, window_bounds = array<i64: 256, 2>}, {pipeline_mode = #tpu.pipeline_mode<synchronous>, transform_indices = @transform_8, window_bounds = array<i64: 1, 2>}, {transform_indices = @transform_9, window_bounds = array<i64: 32, 2>}]} {
    %c0 = arith.constant 0 : index
    %c0_0 = arith.constant 0 : index
    %0 = vector.load %arg1[%c0, %c0_0] : memref<32x128xf32, #tpu.memory_space<vmem>>, vector<32x128xf32>
    %1 = tpu.iota {dimensions = array<i32: 0>} : vector<16x1xi32>
    %2 = tpu.concatenate %1, %1 in 0 : vector<16x1xi32>, vector<16x1xi32> -> vector<32x1xi32>
    %c1_i32 = arith.constant 1 : i32
    %3 = vector.broadcast %c1_i32 : i32 to vector<32x1xi32>
    %4 = arith.cmpi sge, %2, %3 : vector<32x1xi32>
    %c15_i32 = arith.constant 15 : i32
    %5 = vector.broadcast %c15_i32 : i32 to vector<32x1xi32>
    %6 = arith.cmpi slt, %2, %5 : vector<32x1xi32>
    %c0_1 = arith.constant 0 : index
    %c0_2 = arith.constant 0 : index
    %7 = vector.load %arg2[%c0_1, %c0_2] : memref<384x128xbf16, #tpu.memory_space<vmem>>, vector<384x128xbf16>
    %c0_3 = arith.constant 0 : index
    %c0_4 = arith.constant 0 : index
    %8 = vector.load %arg3[%c0_3, %c0_4] : memref<1x128xf32, #tpu.memory_space<vmem>>, vector<1x128xf32>
    %c1_i32_5 = arith.constant 1 : i32
    %9 = tpu.dynamic_rotate %0 by %c1_i32_5 dim 0 : vector<32x128xf32>, i32 -> vector<32x128xf32>
    %cst = arith.constant 0.000000e+00 : f32
    %10 = vector.shape_cast %4 : vector<32x1xi1> to vector<32x1xi1>
    %11 = vector.broadcast %10 : vector<32x1xi1> to vector<32x128xi1>
    %12 = vector.broadcast %cst : f32 to vector<32x128xf32>
    %13 = arith.select %11, %9, %12 : vector<32x128xi1>, vector<32x128xf32>
    %c31_i32 = arith.constant 31 : i32
    %14 = tpu.dynamic_rotate %0 by %c31_i32 dim 0 : vector<32x128xf32>, i32 -> vector<32x128xf32>
    %cst_6 = arith.constant 0.000000e+00 : f32
    %15 = vector.shape_cast %6 : vector<32x1xi1> to vector<32x1xi1>
    %16 = vector.broadcast %15 : vector<32x1xi1> to vector<32x128xi1>
    %17 = vector.broadcast %cst_6 : f32 to vector<32x128xf32>
    %18 = arith.select %16, %14, %17 : vector<32x128xi1>, vector<32x128xf32>
    %19 = arith.truncf %13 : vector<32x128xf32> to vector<32x128xbf16>
    %20 = arith.truncf %0 : vector<32x128xf32> to vector<32x128xbf16>
    %21 = arith.truncf %18 : vector<32x128xf32> to vector<32x128xbf16>
    %22 = tpu.concatenate %19, %20, %21 in 1 : vector<32x128xbf16>, vector<32x128xbf16>, vector<32x128xbf16> -> vector<32x384xbf16>
    %cst_7 = arith.constant dense<0.000000e+00> : vector<32x128xf32>
    %23 = tpu.matmul %22, %7, %cst_7 {dimension_numbers = #tpu.dot_dimension_numbers<[1], [0], [0], [1], [0, 0, 1, 1], [], []>} : vector<32x384xbf16>, vector<384x128xbf16>, vector<32x128xf32> -> vector<32x128xf32>
    %24 = vector.broadcast %8 : vector<1x128xf32> to vector<32x128xf32>
    %25 = arith.addf %23, %24 : vector<32x128xf32>
    %cst_8 = arith.constant 0.00999999977 : f32
    %26 = vector.broadcast %cst_8 : f32 to vector<32x128xf32>
    %27 = arith.mulf %26, %25 : vector<32x128xf32>
    %28 = arith.maximumf %25, %27 : vector<32x128xf32>
    %c0_i32 = arith.constant 0 : i32
    %c8_i32 = arith.constant 8 : i32
    %29 = arith.addi %c0_i32, %c8_i32 : i32
    %c1_i32_9 = arith.constant 1 : i32
    %30 = scf.for %arg11 = %c0_i32 to %29 step %c1_i32_9 iter_args(%arg12 = %28) -> (vector<32x128xf32>)  : i32 {
      %60 = arith.index_cast %arg11 : i32 to index
      %c0_28 = arith.constant 0 : index
      %c0_29 = arith.constant 0 : index
      %61 = vector.load %arg4[%60, %c0_28, %c0_29] : memref<8x384x128xbf16, #tpu.memory_space<vmem>>, vector<1x384x128xbf16>
      %62 = vector.shape_cast %61 : vector<1x384x128xbf16> to vector<384x128xbf16>
      %63 = arith.index_cast %arg11 : i32 to index
      %c0_30 = arith.constant 0 : index
      %c0_31 = arith.constant 0 : index
      %64 = vector.load %arg5[%63, %c0_30, %c0_31] : memref<8x1x128xf32, #tpu.memory_space<vmem>>, vector<1x1x128xf32>
      %65 = vector.shape_cast %64 : vector<1x1x128xf32> to vector<1x128xf32>
      %c1_i32_32 = arith.constant 1 : i32
      %66 = tpu.dynamic_rotate %arg12 by %c1_i32_32 dim 0 : vector<32x128xf32>, i32 -> vector<32x128xf32>
      %cst_33 = arith.constant 0.000000e+00 : f32
      %67 = vector.shape_cast %4 : vector<32x1xi1> to vector<32x1xi1>
      %68 = vector.broadcast %67 : vector<32x1xi1> to vector<32x128xi1>
      %69 = vector.broadcast %cst_33 : f32 to vector<32x128xf32>
      %70 = arith.select %68, %66, %69 : vector<32x128xi1>, vector<32x128xf32>
      %c31_i32_34 = arith.constant 31 : i32
      %71 = tpu.dynamic_rotate %arg12 by %c31_i32_34 dim 0 : vector<32x128xf32>, i32 -> vector<32x128xf32>
      %cst_35 = arith.constant 0.000000e+00 : f32
      %72 = vector.shape_cast %6 : vector<32x1xi1> to vector<32x1xi1>
      %73 = vector.broadcast %72 : vector<32x1xi1> to vector<32x128xi1>
      %74 = vector.broadcast %cst_35 : f32 to vector<32x128xf32>
      %75 = arith.select %73, %71, %74 : vector<32x128xi1>, vector<32x128xf32>
      %76 = arith.truncf %70 : vector<32x128xf32> to vector<32x128xbf16>
      %77 = arith.truncf %arg12 : vector<32x128xf32> to vector<32x128xbf16>
      %78 = arith.truncf %75 : vector<32x128xf32> to vector<32x128xbf16>
      %79 = tpu.concatenate %76, %77, %78 in 1 : vector<32x128xbf16>, vector<32x128xbf16>, vector<32x128xbf16> -> vector<32x384xbf16>
      %cst_36 = arith.constant dense<0.000000e+00> : vector<32x128xf32>
      %80 = tpu.matmul %79, %62, %cst_36 {dimension_numbers = #tpu.dot_dimension_numbers<[1], [0], [0], [1], [0, 0, 1, 1], [], []>} : vector<32x384xbf16>, vector<384x128xbf16>, vector<32x128xf32> -> vector<32x128xf32>
      %81 = vector.broadcast %65 : vector<1x128xf32> to vector<32x128xf32>
      %82 = arith.addf %80, %81 : vector<32x128xf32>
      %cst_37 = arith.constant 0.00999999977 : f32
      %83 = vector.broadcast %cst_37 : f32 to vector<32x128xf32>
      %84 = arith.mulf %83, %82 : vector<32x128xf32>
      %85 = arith.maximumf %82, %84 : vector<32x128xf32>
      scf.yield %85 : vector<32x128xf32>
    }
    %c8_i32_10 = arith.constant 8 : i32
    %c0_11 = arith.constant 0 : index
    %c0_12 = arith.constant 0 : index
    %31 = vector.load %arg6[%c0_11, %c0_12] : memref<384x256xbf16, #tpu.memory_space<vmem>>, vector<384x256xbf16>
    %c0_13 = arith.constant 0 : index
    %c0_14 = arith.constant 0 : index
    %32 = vector.load %arg7[%c0_13, %c0_14] : memref<1x256xf32, #tpu.memory_space<vmem>>, vector<1x256xf32>
    %c1_i32_15 = arith.constant 1 : i32
    %33 = tpu.dynamic_rotate %30 by %c1_i32_15 dim 0 : vector<32x128xf32>, i32 -> vector<32x128xf32>
    %cst_16 = arith.constant 0.000000e+00 : f32
    %34 = vector.shape_cast %4 : vector<32x1xi1> to vector<32x1xi1>
    %35 = vector.broadcast %34 : vector<32x1xi1> to vector<32x128xi1>
    %36 = vector.broadcast %cst_16 : f32 to vector<32x128xf32>
    %37 = arith.select %35, %33, %36 : vector<32x128xi1>, vector<32x128xf32>
    %c31_i32_17 = arith.constant 31 : i32
    %38 = tpu.dynamic_rotate %30 by %c31_i32_17 dim 0 : vector<32x128xf32>, i32 -> vector<32x128xf32>
    %cst_18 = arith.constant 0.000000e+00 : f32
    %39 = vector.shape_cast %6 : vector<32x1xi1> to vector<32x1xi1>
    %40 = vector.broadcast %39 : vector<32x1xi1> to vector<32x128xi1>
    %41 = vector.broadcast %cst_18 : f32 to vector<32x128xf32>
    %42 = arith.select %40, %38, %41 : vector<32x128xi1>, vector<32x128xf32>
    %43 = arith.truncf %37 : vector<32x128xf32> to vector<32x128xbf16>
    %44 = arith.truncf %30 : vector<32x128xf32> to vector<32x128xbf16>
    %45 = arith.truncf %42 : vector<32x128xf32> to vector<32x128xbf16>
    %46 = tpu.concatenate %43, %44, %45 in 1 : vector<32x128xbf16>, vector<32x128xbf16>, vector<32x128xbf16> -> vector<32x384xbf16>
    %cst_19 = arith.constant dense<0.000000e+00> : vector<32x256xf32>
    %47 = tpu.matmul %46, %31, %cst_19 {dimension_numbers = #tpu.dot_dimension_numbers<[1], [0], [0], [1], [0, 0, 1, 1], [], []>} : vector<32x384xbf16>, vector<384x256xbf16>, vector<32x256xf32> -> vector<32x256xf32>
    %48 = vector.broadcast %32 : vector<1x256xf32> to vector<32x256xf32>
    %49 = arith.addf %47, %48 : vector<32x256xf32>
    %cst_20 = arith.constant 0.00999999977 : f32
    %50 = vector.broadcast %cst_20 : f32 to vector<32x256xf32>
    %51 = arith.mulf %50, %49 : vector<32x256xf32>
    %52 = arith.maximumf %49, %51 : vector<32x256xf32>
    %53 = arith.truncf %52 : vector<32x256xf32> to vector<32x256xbf16>
    %c0_21 = arith.constant 0 : index
    %c0_22 = arith.constant 0 : index
    %54 = vector.load %arg8[%c0_21, %c0_22] : memref<256x2xbf16, #tpu.memory_space<vmem>>, vector<256x2xbf16>
    %cst_23 = arith.constant dense<0.000000e+00> : vector<32x2xf32>
    %55 = tpu.matmul %53, %54, %cst_23 {dimension_numbers = #tpu.dot_dimension_numbers<[1], [0], [0], [1], [0, 0, 1, 1], [], []>} : vector<32x256xbf16>, vector<256x2xbf16>, vector<32x2xf32> -> vector<32x2xf32>
    %c0_24 = arith.constant 0 : index
    %c0_25 = arith.constant 0 : index
    %56 = vector.load %arg9[%c0_24, %c0_25] : memref<1x2xf32, #tpu.memory_space<vmem>>, vector<1x2xf32>
    %57 = vector.broadcast %56 : vector<1x2xf32> to vector<32x2xf32>
    %58 = arith.addf %55, %57 : vector<32x2xf32>
    %c0_26 = arith.constant 0 : index
    %c0_27 = arith.constant 0 : index
    %59 = vector.load %arg10[%c0_26, %c0_27] : memref<32x2xf32, #tpu.memory_space<vmem>>, vector<32x2xf32>
    tpu.vector_store %arg10[%c0_26, %c0_27], %58 {strides = array<i32>} : memref<32x2xf32, #tpu.memory_space<vmem>>, vector<32x2xf32>,
    return
  }
  func.func @transform_0(%arg0: i32) -> (i32, i32) {
    %c0_i32 = arith.constant 0 : i32
    %c0_i32_0 = arith.constant 0 : i32
    return %arg0, %c0_i32 : i32, i32
  }
  func.func @transform_1(%arg0: i32) -> (i32, i32) {
    %c0_i32 = arith.constant 0 : i32
    %c0_i32_0 = arith.constant 0 : i32
    %c0_i32_1 = arith.constant 0 : i32
    return %c0_i32, %c0_i32_0 : i32, i32
  }
  func.func @transform_2(%arg0: i32) -> (i32, i32) {
    %c0_i32 = arith.constant 0 : i32
    %c0_i32_0 = arith.constant 0 : i32
    %c0_i32_1 = arith.constant 0 : i32
    return %c0_i32, %c0_i32_0 : i32, i32
  }
  func.func @transform_3(%arg0: i32) -> (i32, i32, i32) {
    %c0_i32 = arith.constant 0 : i32
    %c0_i32_0 = arith.constant 0 : i32
    %c0_i32_1 = arith.constant 0 : i32
    %c0_i32_2 = arith.constant 0 : i32
    return %c0_i32, %c0_i32_0, %c0_i32_1 : i32, i32, i32
  }
  func.func @transform_4(%arg0: i32) -> (i32, i32, i32) {
    %c0_i32 = arith.constant 0 : i32
    %c0_i32_0 = arith.constant 0 : i32
    %c0_i32_1 = arith.constant 0 : i32
    %c0_i32_2 = arith.constant 0 : i32
    return %c0_i32, %c0_i32_0, %c0_i32_1 : i32, i32, i32
  }
  func.func @transform_5(%arg0: i32) -> (i32, i32) {
    %c0_i32 = arith.constant 0 : i32
    %c0_i32_0 = arith.constant 0 : i32
    %c0_i32_1 = arith.constant 0 : i32
    return %c0_i32, %c0_i32_0 : i32, i32
  }
  func.func @transform_6(%arg0: i32) -> (i32, i32) {
    %c0_i32 = arith.constant 0 : i32
    %c0_i32_0 = arith.constant 0 : i32
    %c0_i32_1 = arith.constant 0 : i32
    return %c0_i32, %c0_i32_0 : i32, i32
  }
  func.func @transform_7(%arg0: i32) -> (i32, i32) {
    %c0_i32 = arith.constant 0 : i32
    %c0_i32_0 = arith.constant 0 : i32
    %c0_i32_1 = arith.constant 0 : i32
    return %c0_i32, %c0_i32_0 : i32, i32
  }
  func.func @transform_8(%arg0: i32) -> (i32, i32) {
    %c0_i32 = arith.constant 0 : i32
    %c0_i32_0 = arith.constant 0 : i32
    %c0_i32_1 = arith.constant 0 : i32
    return %c0_i32, %c0_i32_0 : i32, i32
  }
  func.func @transform_9(%arg0: i32) -> (i32, i32) {
    %c0_i32 = arith.constant 0 : i32
    %c0_i32_0 = arith.constant 0 : i32
    return %arg0, %c0_i32 : i32, i32
  }
}

</mosaic_0001>

<llo_original>
// kernel: pitch_predictor_pallas.1
$region0: #{pitch_predictor_pallas.1}
  #allocation0 [shape = 'u32[]', space=smem, size = 0x4, offset = 0x4, fixed_abs, tag = 'smem constant byte address 0x4 - core index']
  #allocation1 [shape = 'u32[144,128]{1,0:T(1,128)}', space=vmem, size = 0x12000, scoped, tag = 'internal scratch']
  %s0 = inlined_call_operand.vmem [shape: f32[64,128], index: 0, kind: input, shape index: {}]
  %s1 = inlined_call_operand.vmem [shape: bf16[384,128], index: 1, kind: input, shape index: {}]
  %s2 = inlined_call_operand.vmem [shape: f32[1,128], index: 2, kind: input, shape index: {}]
  %s3 = inlined_call_operand.hbm [shape: bf16[8,384,128], index: 3, kind: input, shape index: {}]
  %s4 = inlined_call_operand.vmem [shape: f32[8,1,128], index: 4, kind: input, shape index: {}]
  %s5 = inlined_call_operand.vmem [shape: bf16[384,256], index: 5, kind: input, shape index: {}]
  %s6 = inlined_call_operand.vmem [shape: f32[1,256], index: 6, kind: input, shape index: {}]
  %s7 = inlined_call_operand.vmem [shape: bf16[256,2], index: 7, kind: input, shape index: {}]
  %s8 = inlined_call_operand.vmem [shape: f32[1,2], index: 8, kind: input, shape index: {}]
  %s9 = inlined_call_operand.vmem [shape: f32[64,2], index: 9, kind: output, shape index: {}]
  %s10 = sld [smem:[#allocation0]]
  $region80: #{pitch_predictor_pallas.1} parent=0
    _
  %s12 = ssub.s32 1, %s10
  %s13 = scalar_select 0, %s12, %s10
  $region1: #{pitch_predictor_pallas.1} parent=0
    #allocation2 [shape = 'u8[786432]{0}', space=vmem, size = 0xc0000, scoped, tag = 'input window, operand 3, single buffered']
    #allocation3 [shape = 's32[2]{0}', space=sflag, size = 0x8, scoped, tag = 'scoped memory for pitch_predictor_pallas.1']
    %14 = vsyncpa [#allocation3], 0
    loop: start=0, step=1, limit=4
    $region2: #{pitch_predictor_pallas.1} parent=1 // loop_pre_header
      _
    $region3: #{pitch_predictor_pallas.1} parent=1 // loop_header
      %s16 = sphi 0, %s20
      %p17 = scmp.ge.s32.totalorder %s16, 4
      %s26 = sphi 0, %s28
      %s29 = sphi 0, %s26
      %s30 = sphi 0, %s29
      %s46 = sphi 0, %s30
      %s50 = sphi 0, %s50
      %s52 = sphi 0, %s50
      %s53 = sphi 0, %s52
      %s67 = sphi 0, %s53
      %s71 = sphi 0, %s71
      %s73 = sphi 0, %s71
      %s74 = sphi 0, %s73
      %s88 = sphi 0, %s74
      %s92 = sphi 0, %s92
      %s94 = sphi 0, %s92
      %s95 = sphi 0, %s94
      %s109 = sphi 0, %s95
      %s113 = sphi 0, %s113
      %s115 = sphi 0, %s113
      %s116 = sphi 0, %s115
      %s130 = sphi 0, %s116
      %s134 = sphi 0, %s134
      %s136 = sphi 0, %s134
      %s137 = sphi 0, %s136
      %s151 = sphi 0, %s137
      %s155 = sphi 0, %s155
      %s157 = sphi 0, %s155
      %s158 = sphi 0, %s157
      %s172 = sphi 0, %s158
      %s176 = sphi 0, %s176
      %s178 = sphi 0, %s176
      %s179 = sphi 0, %s178
      %s193 = sphi 0, %s179
      %s197 = sphi 0, %s197
      %s199 = sphi 0, %s197
      %s200 = sphi 0, %s199
      %s214 = sphi 0, %s200
      %s220 = sphi 0, %s222
      %s223 = sphi 0, %s220
      %s224 = sphi 0, %s223
      %s240 = sphi 0, %s224
    $region4: #{pitch_predictor_pallas.1} parent=1 // loop_header_branch
      %19 = sbr.rel (%p17) target = $region8
    $region5: #{pitch_predictor_pallas.1} parent=1 // loop_body
      %s21 = ssub.s32 %s16, 1
      %s22 = ssub.s32 %s16, 2
      %s23 = sadd.s32 %s16, 1
      %s24 = ssub.s32 %s16, %s23
      %p25 = scmp.eq.s32.totalorder %s24, 0
      %s27 = sadd.s32 %s26, 1
      %s28 = scalar_select %p25, %s26, %s27
      %p31 = pneg %p25
      %p32 = scmp.eq.s32.totalorder %s16, 1
      %p33 = por %p31, %p32
      %p34 = scmp.ne.s32.totalorder %s26, %s29
      %p35 = scmp.eq.s32.totalorder %s16, 0
      %p36 = por %p34, %p35
      %p37 = scmp.ne.s32.totalorder %s26, %s29
      %p38 = scmp.eq.s32.totalorder %s21, 1
      %p39 = por %p37, %p38
      %p40 = scmp.ne.s32.totalorder %s29, %s30
      %p41 = scmp.eq.s32.totalorder %s21, 0
      %p42 = por %p40, %p41
      %p43 = scmp.ne.s32.totalorder %s29, %s30
      %p44 = scmp.eq.s32.totalorder %s22, 1
      %p45 = por %p43, %p44
      %p47 = scmp.ne.s32.totalorder %s30, %s46
      %p48 = scmp.eq.s32.totalorder %s22, 0
      %p49 = por %p47, %p48
      %s51 = sadd.s32 %s50, 1
      %p54 = scmp.eq.s32.totalorder %s16, 1
      %p55 = scmp.ne.s32.totalorder %s50, %s52
      %p56 = scmp.eq.s32.totalorder %s16, 0
      %p57 = por %p55, %p56
      %p58 = scmp.ne.s32.totalorder %s50, %s52
      %p59 = scmp.eq.s32.totalorder %s21, 1
      %p60 = por %p58, %p59
      %p61 = scmp.ne.s32.totalorder %s52, %s53
      %p62 = scmp.eq.s32.totalorder %s21, 0
      %p63 = por %p61, %p62
      %p64 = scmp.ne.s32.totalorder %s52, %s53
      %p65 = scmp.eq.s32.totalorder %s22, 1
      %p66 = por %p64, %p65
      %p68 = scmp.ne.s32.totalorder %s53, %s67
      %p69 = scmp.eq.s32.totalorder %s22, 0
      %p70 = por %p68, %p69
      %s72 = sadd.s32 %s71, 1
      %p75 = scmp.eq.s32.totalorder %s16, 1
      %p76 = scmp.ne.s32.totalorder %s71, %s73
      %p77 = scmp.eq.s32.totalorder %s16, 0
      %p78 = por %p76, %p77
      %p79 = scmp.ne.s32.totalorder %s71, %s73
      %p80 = scmp.eq.s32.totalorder %s21, 1
      %p81 = por %p79, %p80
      %p82 = scmp.ne.s32.totalorder %s73, %s74
      %p83 = scmp.eq.s32.totalorder %s21, 0
      %p84 = por %p82, %p83
      %p85 = scmp.ne.s32.totalorder %s73, %s74
      %p86 = scmp.eq.s32.totalorder %s22, 1
      %p87 = por %p85, %p86
      %p89 = scmp.ne.s32.totalorder %s74, %s88
      %p90 = scmp.eq.s32.totalorder %s22, 0
      %p91 = por %p89, %p90
      %s93 = sadd.s32 %s92, 1
      %p96 = scmp.eq.s32.totalorder %s16, 1
      %p97 = scmp.ne.s32.totalorder %s92, %s94
      %p98 = scmp.eq.s32.totalorder %s16, 0
      %p99 = por %p97, %p98
      %p100 = scmp.ne.s32.totalorder %s92, %s94
      %p101 = scmp.eq.s32.totalorder %s21, 1
      %p102 = por %p100, %p101
      %p103 = scmp.ne.s32.totalorder %s94, %s95
      %p104 = scmp.eq.s32.totalorder %s21, 0
      %p105 = por %p103, %p104
      %p106 = scmp.ne.s32.totalorder %s94, %s95
      %p107 = scmp.eq.s32.totalorder %s22, 1
      %p108 = por %p106, %p107
      %p110 = scmp.ne.s32.totalorder %s95, %s109
      %p111 = scmp.eq.s32.totalorder %s22, 0
      %p112 = por %p110, %p111
      %s114 = sadd.s32 %s113, 1
      %p117 = scmp.eq.s32.totalorder %s16, 1
      %p118 = scmp.ne.s32.totalorder %s113, %s115
      %p119 = scmp.eq.s32.totalorder %s16, 0
      %p120 = por %p118, %p119
      %p121 = scmp.ne.s32.totalorder %s113, %s115
      %p122 = scmp.eq.s32.totalorder %s21, 1
      %p123 = por %p121, %p122
      %p124 = scmp.ne.s32.totalorder %s115, %s116
      %p125 = scmp.eq.s32.totalorder %s21, 0
      %p126 = por %p124, %p125
      %p127 = scmp.ne.s32.totalorder %s115, %s116
      %p128 = scmp.eq.s32.totalorder %s22, 1
      %p129 = por %p127, %p128
      %p131 = scmp.ne.s32.totalorder %s116, %s130
      %p132 = scmp.eq.s32.totalorder %s22, 0
      %p133 = por %p131, %p132
      %s135 = sadd.s32 %s134, 1
      %p138 = scmp.eq.s32.totalorder %s16, 1
      %p139 = scmp.ne.s32.totalorder %s134, %s136
      %p140 = scmp.eq.s32.totalorder %s16, 0
      %p141 = por %p139, %p140
      %p142 = scmp.ne.s32.totalorder %s134, %s136
      %p143 = scmp.eq.s32.totalorder %s21, 1
      %p144 = por %p142, %p143
      %p145 = scmp.ne.s32.totalorder %s136, %s137
      %p146 = scmp.eq.s32.totalorder %s21, 0
      %p147 = por %p145, %p146
      %p148 = scmp.ne.s32.totalorder %s136, %s137
      %p149 = scmp.eq.s32.totalorder %s22, 1
      %p150 = por %p148, %p149
      %p152 = scmp.ne.s32.totalorder %s137, %s151
      %p153 = scmp.eq.s32.totalorder %s22, 0
      %p154 = por %p152, %p153
      %s156 = sadd.s32 %s155, 1
      %p159 = scmp.eq.s32.totalorder %s16, 1
      %p160 = scmp.ne.s32.totalorder %s155, %s157
      %p161 = scmp.eq.s32.totalorder %s16, 0
      %p162 = por %p160, %p161
      %p163 = scmp.ne.s32.totalorder %s155, %s157
      %p164 = scmp.eq.s32.totalorder %s21, 1
      %p165 = por %p163, %p164
      %p166 = scmp.ne.s32.totalorder %s157, %s158
      %p167 = scmp.eq.s32.totalorder %s21, 0
      %p168 = por %p166, %p167
      %p169 = scmp.ne.s32.totalorder %s157, %s158
      %p170 = scmp.eq.s32.totalorder %s22, 1
      %p171 = por %p169, %p170
      %p173 = scmp.ne.s32.totalorder %s158, %s172
      %p174 = scmp.eq.s32.totalorder %s22, 0
      %p175 = por %p173, %p174
      %s177 = sadd.s32 %s176, 1
      %p180 = scmp.eq.s32.totalorder %s16, 1
      %p181 = scmp.ne.s32.totalorder %s176, %s178
      %p182 = scmp.eq.s32.totalorder %s16, 0
      %p183 = por %p181, %p182
      %p184 = scmp.ne.s32.totalorder %s176, %s178
      %p185 = scmp.eq.s32.totalorder %s21, 1
      %p186 = por %p184, %p185
      %p187 = scmp.ne.s32.totalorder %s178, %s179
      %p188 = scmp.eq.s32.totalorder %s21, 0
      %p189 = por %p187, %p188
      %p190 = scmp.ne.s32.totalorder %s178, %s179
      %p191 = scmp.eq.s32.totalorder %s22, 1
      %p192 = por %p190, %p191
      %p194 = scmp.ne.s32.totalorder %s179, %s193
      %p195 = scmp.eq.s32.totalorder %s22, 0
      %p196 = por %p194, %p195
      %s198 = sadd.s32 %s197, 1
      %p201 = scmp.eq.s32.totalorder %s16, 1
      %p202 = scmp.ne.s32.totalorder %s197, %s199
      %p203 = scmp.eq.s32.totalorder %s16, 0
      %p204 = por %p202, %p203
      %p205 = scmp.ne.s32.totalorder %s197, %s199
      %p206 = scmp.eq.s32.totalorder %s21, 1
      %p207 = por %p205, %p206
      %p208 = scmp.ne.s32.totalorder %s199, %s200
      %p209 = scmp.eq.s32.totalorder %s21, 0
      %p210 = por %p208, %p209
      %p211 = scmp.ne.s32.totalorder %s199, %s200
      %p212 = scmp.eq.s32.totalorder %s22, 1
      %p213 = por %p211, %p212
      %p215 = scmp.ne.s32.totalorder %s200, %s214
      %p216 = scmp.eq.s32.totalorder %s22, 0
      %p217 = por %p215, %p216
      %s218 = ssub.s32 %s16, %s23
      %p219 = scmp.eq.s32.totalorder %s218, 0
      %s221 = sadd.s32 %s220, 1
      %s222 = scalar_select %p219, %s220, %s221
      %p225 = pneg %p219
      %p226 = scmp.eq.s32.totalorder %s16, 1
      %p227 = por %p225, %p226
      %p228 = scmp.ne.s32.totalorder %s220, %s223
      %p229 = scmp.eq.s32.totalorder %s16, 0
      %p230 = por %p228, %p229
      %p231 = scmp.ne.s32.totalorder %s220, %s223
      %p232 = scmp.eq.s32.totalorder %s21, 1
      %p233 = por %p231, %p232
      %p234 = scmp.ne.s32.totalorder %s223, %s224
      %p235 = scmp.eq.s32.totalorder %s21, 0
      %p236 = por %p234, %p235
      %p237 = scmp.ne.s32.totalorder %s223, %s224
      %p238 = scmp.eq.s32.totalorder %s22, 1
      %p239 = por %p237, %p238
      %p241 = scmp.ne.s32.totalorder %s224, %s240
      %p242 = scmp.eq.s32.totalorder %s22, 0
      %p243 = por %p241, %p242
      %p244 = scmp.le.s32.totalorder 1, %s16
      %p245 = scmp.lt.s32.totalorder %s16, 3
      %p246 = pnand %p244, %p245
      %p247 = pneg %p246
      // Predicated region
      $region9: #{pitch_predictor_pallas.1} parent=5 // pred_check
        _
      $region10: #{pitch_predictor_pallas.1} parent=5 // pred_check_branch
        %249 = sbr.rel (%p246) target = $region12
      $region11: #{pitch_predictor_pallas.1} parent=5 // pred_region
        %s250 = ssub.s32 %s16, 1
        // Predicated region
        $region13: #{pitch_predictor_pallas.1} parent=11 // pred_check
          %p251 = pneg %p63
        $region14: #{pitch_predictor_pallas.1} parent=11 // pred_check_branch
          %253 = sbr.rel (%p251) target = $region16
        $region15: #{pitch_predictor_pallas.1} parent=11 // pred_region
          _
        $region16: #{pitch_predictor_pallas.1} parent=11 // pred_fallthru
          _
        // Predicated region
        $region17: #{pitch_predictor_pallas.1} parent=11 // pred_check
          %p254 = pneg %p84
        $region18: #{pitch_predictor_pallas.1} parent=11 // pred_check_branch
          %256 = sbr.rel (%p254) target = $region20
        $region19: #{pitch_predictor_pallas.1} parent=11 // pred_region
          _
        $region20: #{pitch_predictor_pallas.1} parent=11 // pred_fallthru
          _
        // Predicated region
        $region21: #{pitch_predictor_pallas.1} parent=11 // pred_check
          %p257 = pneg %p105
        $region22: #{pitch_predictor_pallas.1} parent=11 // pred_check_branch
          %259 = sbr.rel (%p257) target = $region24
        $region23: #{pitch_predictor_pallas.1} parent=11 // pred_region
          %s261 = ssub.s32 24576, 24576
          %262 = vsyncadd [#allocation3], %s261
          %s263 = sshll.u32 [#allocation2], 4
          %s264 = int_to_ptr.vmem [resolvable:$true] %s263
          %269 = dma.hbm_to_vmem [thread:$0]  %s3, 24576, %s264, [#allocation3], 64, 64, 4
        $region24: #{pitch_predictor_pallas.1} parent=11 // pred_fallthru
          _
        // Predicated region
        $region25: #{pitch_predictor_pallas.1} parent=11 // pred_check
          %p270 = pneg %p126
        $region26: #{pitch_predictor_pallas.1} parent=11 // pred_check_branch
          %272 = sbr.rel (%p270) target = $region28
        $region27: #{pitch_predictor_pallas.1} parent=11 // pred_region
          _
        $region28: #{pitch_predictor_pallas.1} parent=11 // pred_fallthru
          _
        // Predicated region
        $region29: #{pitch_predictor_pallas.1} parent=11 // pred_check
          %p273 = pneg %p147
        $region30: #{pitch_predictor_pallas.1} parent=11 // pred_check_branch
          %275 = sbr.rel (%p273) target = $region32
        $region31: #{pitch_predictor_pallas.1} parent=11 // pred_region
          _
        $region32: #{pitch_predictor_pallas.1} parent=11 // pred_fallthru
          _
        // Predicated region
        $region33: #{pitch_predictor_pallas.1} parent=11 // pred_check
          %p276 = pneg %p168
        $region34: #{pitch_predictor_pallas.1} parent=11 // pred_check_branch
          %278 = sbr.rel (%p276) target = $region36
        $region35: #{pitch_predictor_pallas.1} parent=11 // pred_region
          _
        $region36: #{pitch_predictor_pallas.1} parent=11 // pred_fallthru
          _
        // Predicated region
        $region37: #{pitch_predictor_pallas.1} parent=11 // pred_check
          %p279 = pneg %p189
        $region38: #{pitch_predictor_pallas.1} parent=11 // pred_check_branch
          %281 = sbr.rel (%p279) target = $region40
        $region39: #{pitch_predictor_pallas.1} parent=11 // pred_region
          _
        $region40: #{pitch_predictor_pallas.1} parent=11 // pred_fallthru
          _
        // Predicated region
        $region41: #{pitch_predictor_pallas.1} parent=11 // pred_check
          %p282 = pneg %p210
        $region42: #{pitch_predictor_pallas.1} parent=11 // pred_check_branch
          %284 = sbr.rel (%p282) target = $region44
        $region43: #{pitch_predictor_pallas.1} parent=11 // pred_region
          _
        $region44: #{pitch_predictor_pallas.1} parent=11 // pred_fallthru
          _
      $region12: #{pitch_predictor_pallas.1} parent=5 // pred_fallthru
        _
      %p285 = scmp.lt.s32.totalorder %s16, 2
      // Predicated region
      $region45: #{pitch_predictor_pallas.1} parent=5 // pred_check
        %p286 = pneg %p285
      $region46: #{pitch_predictor_pallas.1} parent=5 // pred_check_branch
        %288 = sbr.rel (%p286) target = $region48
      $region47: #{pitch_predictor_pallas.1} parent=5 // pred_region
        // Predicated region
        $region49: #{pitch_predictor_pallas.1} parent=47 // pred_check
          %p289 = pneg %p36
        $region50: #{pitch_predictor_pallas.1} parent=47 // pred_check_branch
          %291 = sbr.rel (%p289) target = $region52
        $region51: #{pitch_predictor_pallas.1} parent=47 // pred_region
          %s292 = smul.u32 4, %s16
          %p293 = scmp.lt.s32.totalorder %s292, 7
          %s294 = scalar_select %p293, %s292, 7
          %s295 = smul.addr %s294, 8
          %s296 = scalar_lea.vmem %s0, %s295
          %s297 = smul.u32 4, %s16
        $region52: #{pitch_predictor_pallas.1} parent=47 // pred_fallthru
          _
      $region48: #{pitch_predictor_pallas.1} parent=5 // pred_fallthru
        _
      %p298 = scmp.le.s32.totalorder 1, %s16
      %p299 = scmp.lt.s32.totalorder %s16, 3
      %p300 = pnand %p298, %p299
      %p301 = pneg %p300
      // Predicated region
      $region53: #{pitch_predictor_pallas.1} parent=5 // pred_check
        _
      $region54: #{pitch_predictor_pallas.1} parent=5 // pred_check_branch
        %303 = sbr.rel (%p300) target = $region56
      $region55: #{pitch_predictor_pallas.1} parent=5 // pred_region
        %s304 = ssub.s32 %s16, 1
        // Predicated region
        $region57: #{pitch_predictor_pallas.1} parent=55 // pred_check
          %p305 = pneg %p105
        $region58: #{pitch_predictor_pallas.1} parent=55 // pred_check_branch
          %307 = sbr.rel (%p305) target = $region60
        $region59: #{pitch_predictor_pallas.1} parent=55 // pred_region
          %308 = dma.done [#allocation3], 24576
        $region60: #{pitch_predictor_pallas.1} parent=55 // pred_fallthru
          _
        %s309 = smul.u32 4, %s21
        %p310 = scmp.lt.s32.totalorder %s309, 7
        %s311 = scalar_select %p310, %s309, 7
        %s312 = smul.addr %s311, 8
        %s313 = scalar_lea.vmem %s0, %s312
        %p314 = pneg %p42
        %p315 = pneg %p39
        %p316 = pneg %p63
        %p317 = pneg %p60
        %p318 = pneg %p84
        %p319 = pneg %p81
        %p320 = pneg %p105
        %p321 = pneg %p102
        %p322 = pneg %p126
        %p323 = pneg %p123
        %p324 = pneg %p147
        %p325 = pneg %p144
        %p326 = pneg %p168
        %p327 = pneg %p165
        %p328 = pneg %p189
        %p329 = pneg %p186
        %p330 = pneg %p210
        %p331 = pneg %p207
        %p332 = pneg %p236
        %p333 = pneg %p233
        %s334 = smul.u32 4, %s21
        %p335 = scmp.lt.s32.totalorder %s334, 7
        %s336 = scalar_select %p335, %s334, 7
        %s337 = smul.addr %s336, 8
        %s338 = scalar_lea.vmem %s9, %s337
        %s339 = smul.u32 4, %s21
        %p340 = scmp.lt.s32.totalorder %s339, 7
        %s341 = scalar_select %p340, %s339, 7
        %s342 = smul.addr %s341, 8
        %s343 = scalar_lea.vmem %s0, %s342
        %s344 = smul.u32 4, %s21
        %s345 = smul.u32 4, %s21
        %p346 = scmp.lt.s32.totalorder %s345, 7
        %s347 = scalar_select %p346, %s345, 7
        %s348 = smul.addr %s347, 8
        %s349 = scalar_lea.vmem %s9, %s348
        %s350 = smul.u32 4, %s21
        %v352 = vld [vmem:[%s343] sm:$0xff]
        %v353 = vld [vmem:[%s343 + $0x8] sm:$0xff]
        %v354 = vld [vmem:[%s343 + $0x10] sm:$0xff]
        %v355 = vld [vmem:[%s343 + $0x18] sm:$0xff]
        %v356 = vlaneseq
        %v357 = vshrl.u32 %v356, 7
        %v358 = vadd.s32 %v357, 8
        %vm359 = vcmp.ge.s32.totalorder %v357, 1
        %vm360 = vcmp.ge.s32.totalorder %v358, 1
        %vm361 = vcmp.lt.s32.totalorder %v357, 15
        %vm362 = vcmp.lt.s32.totalorder %v358, 15
        %v363 = vld [vmem:[%s1] sm:$0xf]
        %v364 = vld [vmem:[%s1 + $0x4] sm:$0xf]
        %v365 = vld [vmem:[%s1 + $0x8] sm:$0xf]
        %v366 = vld [vmem:[%s1 + $0xc] sm:$0xf]
        %v367 = vld [vmem:[%s1 + $0x10] sm:$0xf]
        %v368 = vld [vmem:[%s1 + $0x14] sm:$0xf]
        %v369 = vld [vmem:[%s1 + $0x18] sm:$0xf]
        %v370 = vld [vmem:[%s1 + $0x1c] sm:$0xf]
        %v371 = vld [vmem:[%s1 + $0x20] sm:$0xf]
        %v372 = vld [vmem:[%s1 + $0x24] sm:$0xf]
        %v373 = vld [vmem:[%s1 + $0x28] sm:$0xf]
        %v374 = vld [vmem:[%s1 + $0x2c] sm:$0xf]
        %v375 = vld [vmem:[%s1 + $0x30] sm:$0xf]
        %v376 = vld [vmem:[%s1 + $0x34] sm:$0xf]
        %v377 = vld [vmem:[%s1 + $0x38] sm:$0xf]
        %v378 = vld [vmem:[%s1 + $0x3c] sm:$0xf]
        %v379 = vld [vmem:[%s1 + $0x40] sm:$0xf]
        %v380 = vld [vmem:[%s1 + $0x44] sm:$0xf]
        %v381 = vld [vmem:[%s1 + $0x48] sm:$0xf]
        %v382 = vld [vmem:[%s1 + $0x4c] sm:$0xf]
        %v383 = vld [vmem:[%s1 + $0x50] sm:$0xf]
        %v384 = vld [vmem:[%s1 + $0x54] sm:$0xf]
        %v385 = vld [vmem:[%s1 + $0x58] sm:$0xf]
        %v386 = vld [vmem:[%s1 + $0x5c] sm:$0xf]
        %v387 = vld [vmem:[%s1 + $0x60] sm:$0xf]
        %v388 = vld [vmem:[%s1 + $0x64] sm:$0xf]
        %v389 = vld [vmem:[%s1 + $0x68] sm:$0xf]
        %v390 = vld [vmem:[%s1 + $0x6c] sm:$0xf]
        %v391 = vld [vmem:[%s1 + $0x70] sm:$0xf]
        %v392 = vld [vmem:[%s1 + $0x74] sm:$0xf]
        %v393 = vld [vmem:[%s1 + $0x78] sm:$0xf]
        %v394 = vld [vmem:[%s1 + $0x7c] sm:$0xf]
        %v395 = vld [vmem:[%s1 + $0x80] sm:$0xf]
        %v396 = vld [vmem:[%s1 + $0x84] sm:$0xf]
        %v397 = vld [vmem:[%s1 + $0x88] sm:$0xf]
        %v398 = vld [vmem:[%s1 + $0x8c] sm:$0xf]
        %v399 = vld [vmem:[%s1 + $0x90] sm:$0xf]
        %v400 = vld [vmem:[%s1 + $0x94] sm:$0xf]
        %v401 = vld [vmem:[%s1 + $0x98] sm:$0xf]
        %v402 = vld [vmem:[%s1 + $0x9c] sm:$0xf]
        %v403 = vld [vmem:[%s1 + $0xa0] sm:$0xf]
        %v404 = vld [vmem:[%s1 + $0xa4] sm:$0xf]
        %v405 = vld [vmem:[%s1 + $0xa8] sm:$0xf]
        %v406 = vld [vmem:[%s1 + $0xac] sm:$0xf]
        %v407 = vld [vmem:[%s1 + $0xb0] sm:$0xf]
        %v408 = vld [vmem:[%s1 + $0xb4] sm:$0xf]
        %v409 = vld [vmem:[%s1 + $0xb8] sm:$0xf]
        %v410 = vld [vmem:[%s1 + $0xbc] sm:$0xf]
        %v411 = vld [vmem:[%s2] sm:$0x1]
        %v412 = vrot.slane %v352, 7
        %v413 = vrot.slane %v353, 7
        %v414 = vrot.slane %v354, 7
        %v415 = vrot.slane %v355, 7
        %vm416 = vcmp.lt.s32.totalorder %v357, 1
        %v417 = vsel %vm416, %v414, %v415
        %v418 = vsel %vm416, %v413, %v414
        %v419 = vsel %vm416, %v412, %v413
        %v420 = vsel %vm416, %v415, %v412
        %v421 = vsel %vm359, 1, 0
        %v422 = vsel %vm360, 1, 0
        %423 = vset.pattern.permute.xlu0 0
        %424 = vperm.xlu0 %423, %v421
        %v425 = vpop.permute.xlu0 %424
        %426 = vset.pattern.permute.xlu0 0
        %427 = vperm.xlu0 %426, %v422
        %v428 = vpop.permute.xlu0 %427
        %vm429 = vcmp.eq.s32.totalorder %v425, 1
        %vm430 = vcmp.eq.s32.totalorder %v428, 1
        %v431 = vsel %vm429, %v420, 0.0
        %v432 = vsel %vm430, %v419, 0.0
        %v433 = vsel %vm429, %v418, 0.0
        %v434 = vsel %vm430, %v417, 0.0
        %v435 = vrot.slane %v352, 1
        %v436 = vrot.slane %v353, 1
        %v437 = vrot.slane %v354, 1
        %v438 = vrot.slane %v355, 1
        %vm439 = vcmp.lt.s32.totalorder %v357, 7
        %v440 = vsel %vm439, %v437, %v438
        %v441 = vsel %vm439, %v436, %v437
        %v442 = vsel %vm439, %v435, %v436
        %v443 = vsel %vm439, %v438, %v435
        %v444 = vsel %vm361, 1, 0
        %v445 = vsel %vm362, 1, 0
        %446 = vset.pattern.permute.xlu0 0
        %447 = vperm.xlu0 %446, %v444
        %v448 = vpop.permute.xlu0 %447
        %449 = vset.pattern.permute.xlu0 0
        %450 = vperm.xlu0 %449, %v445
        %v451 = vpop.permute.xlu0 %450
        %vm452 = vcmp.eq.s32.totalorder %v448, 1
        %vm453 = vcmp.eq.s32.totalorder %v451, 1
        %v454 = vsel %vm452, %v442, 0.0
        %v455 = vsel %vm453, %v441, 0.0
        %v456 = vsel %vm452, %v440, 0.0
        %v457 = vsel %vm453, %v443, 0.0
        %v458 = vpack.c.bf16 %v432, %v431
        %v459 = vpack.c.bf16 %v434, %v433
        %v460 = vpack.c.bf16 %v353, %v352
        %v461 = vpack.c.bf16 %v355, %v354
        %v462 = vpack.c.bf16 %v455, %v454
        %v463 = vpack.c.bf16 %v457, %v456
        %v465 = vlaneseq
        %v466 = vshrl.u32 %v465, 7
        %v467 = vsub.s32 0, %v466
        %v468 = vrot.slane %v411, %v467
        %v518 = vunpack.c.l.b16 %v363
        %v519 = vunpack.c.l.b16 %v364
        %v520 = vunpack.c.l.b16 %v365
        %v521 = vunpack.c.l.b16 %v366
        %v522 = vunpack.c.l.b16 %v367
        %v523 = vunpack.c.l.b16 %v368
        %v524 = vunpack.c.l.b16 %v369
        %v525 = vunpack.c.l.b16 %v370
        %v526 = vunpack.c.l.b16 %v371
        %v527 = vunpack.c.l.b16 %v372
        %v528 = vunpack.c.l.b16 %v373
        %v529 = vunpack.c.l.b16 %v374
        %v530 = vunpack.c.l.b16 %v375
        %v531 = vunpack.c.l.b16 %v376
        %v532 = vunpack.c.l.b16 %v377
        %v533 = vunpack.c.l.b16 %v378
        %v534 = vunpack.c.l.b16 %v379
        %v535 = vunpack.c.l.b16 %v380
        %v536 = vunpack.c.l.b16 %v381
        %v537 = vunpack.c.l.b16 %v382
        %v538 = vunpack.c.l.b16 %v383
        %v539 = vunpack.c.l.b16 %v384
        %v540 = vunpack.c.l.b16 %v385
        %v541 = vunpack.c.l.b16 %v386
        %v542 = vunpack.c.l.b16 %v387
        %v543 = vunpack.c.l.b16 %v388
        %v544 = vunpack.c.l.b16 %v389
        %v545 = vunpack.c.l.b16 %v390
        %v546 = vunpack.c.l.b16 %v391
        %v547 = vunpack.c.l.b16 %v392
        %v548 = vunpack.c.l.b16 %v393
        %v549 = vunpack.c.l.b16 %v394
        %v550 = vunpack.c.l.b16 %v395
        %v551 = vunpack.c.l.b16 %v396
        %v552 = vunpack.c.l.b16 %v397
        %v553 = vunpack.c.l.b16 %v398
        %v554 = vunpack.c.l.b16 %v399
        %v555 = vunpack.c.l.b16 %v400
        %v556 = vunpack.c.l.b16 %v401
        %v557 = vunpack.c.l.b16 %v402
        %v558 = vunpack.c.l.b16 %v403
        %v559 = vunpack.c.l.b16 %v404
        %v560 = vunpack.c.l.b16 %v405
        %v561 = vunpack.c.l.b16 %v406
        %v562 = vunpack.c.l.b16 %v407
        %v563 = vunpack.c.l.b16 %v408
        %v564 = vunpack.c.l.b16 %v409
        %v565 = vunpack.c.l.b16 %v410
        %v566 = vpack.c.b16 %v519, %v518
        %v567 = vpack.c.b16 %v521, %v520
        %v568 = vpack.c.b16 %v523, %v522
        %v569 = vpack.c.b16 %v525, %v524
        %v570 = vpack.c.b16 %v527, %v526
        %v571 = vpack.c.b16 %v529, %v528
        %v572 = vpack.c.b16 %v531, %v530
        %v573 = vpack.c.b16 %v533, %v532
        %v574 = vpack.c.b16 %v535, %v534
        %v575 = vpack.c.b16 %v537, %v536
        %v576 = vpack.c.b16 %v539, %v538
        %v577 = vpack.c.b16 %v541, %v540
        %v578 = vpack.c.b16 %v543, %v542
        %v579 = vpack.c.b16 %v545, %v544
        %v580 = vpack.c.b16 %v547, %v546
        %v581 = vpack.c.b16 %v549, %v548
        %v582 = vpack.c.b16 %v551, %v550
        %v583 = vpack.c.b16 %v553, %v552
        %v584 = vpack.c.b16 %v555, %v554
        %v585 = vpack.c.b16 %v557, %v556
        %v586 = vpack.c.b16 %v559, %v558
        %v587 = vpack.c.b16 %v561, %v560
        %v588 = vpack.c.b16 %v563, %v562
        %v589 = vpack.c.b16 %v565, %v564
        %614 = vmatprep.subr.bf16.mxu0 0
        %615 = vmatpush1.bf16.msra.mxu0 %v566
        %616 = vmatprep.subr.bf16.mxu0 0
        %617 = vmatpush1.bf16.msra.mxu0 %v567
        %618 = vmatprep.subr.bf16.mxu0 0
        %619 = vmatpush1.bf16.msra.mxu0 %v568
        %620 = vmatprep.subr.bf16.mxu0 0
        %621 = vmatpush1.bf16.msra.mxu0 %v569
        %622 = vmatprep.subr.bf16.mxu0 0
        %623 = vmatpush1.bf16.msra.mxu0 %v570
        %624 = vmatprep.subr.bf16.mxu0 0
        %625 = vmatpush1.bf16.msra.mxu0 %v571
        %626 = vmatprep.subr.bf16.mxu0 0
        %627 = vmatpush1.bf16.msra.mxu0 %v572
        %628 = vmatprep.subr.bf16.mxu0 0
        %629 = vmatpush1.bf16.msra.mxu0 %v573
        %630 = vmatprep.subr.bf16.mxu0 0
        %631 = vmatpush1.bf16.msra.mxu0 %v574
        %632 = vmatprep.subr.bf16.mxu0 0
        %633 = vmatpush1.bf16.msra.mxu0 %v575
        %634 = vmatprep.subr.bf16.mxu0 0
        %635 = vmatpush1.bf16.msra.mxu0 %v576
        %636 = vmatprep.subr.bf16.mxu0 0
        %637 = vmatpush1.bf16.msra.mxu0 %v577
        %638 = vmatprep.subr.bf16.mxu0 0
        %639 = vmatpush1.bf16.msra.mxu0 %v578
        %640 = vmatprep.subr.bf16.mxu0 0
        %641 = vmatpush1.bf16.msra.mxu0 %v579
        %642 = vmatprep.subr.bf16.mxu0 0
        %643 = vmatpush1.bf16.msra.mxu0 %v580
        %644 = vmatprep.subr.bf16.mxu0 0
        %645 = vmatpush1.bf16.msra.mxu0 %v581
        %646 = vmatprep.mubr.bf16.mxu0 %v460
        %647 = vmatmul.mubr.bf16.gmra.mrb[0].mxu0 %v458
        %v648 = vpop.f32.mrb[0].mxu0
        %v649 = vadd.f32 %v468, %v648
        %v650 = vpop.f32.mrb[0].mxu0
        %v651 = vpop.f32.mrb[0].mxu0
        %v652 = vadd.f32 %v468, %v651
        %v653 = vpop.f32.mrb[0].mxu0
        %654 = vmatprep.mubr.bf16.mxu0 %v461
        %655 = vmatmul.mubr.bf16.gmra.mrb[0].mxu0 %v459
        %v656 = vpop.f32.mrb[0].mxu0
        %v657 = vadd.f32 %v468, %v656
        %v658 = vpop.f32.mrb[0].mxu0
        %v659 = vpop.f32.mrb[0].mxu0
        %v660 = vadd.f32 %v468, %v659
        %v661 = vpop.f32.mrb[0].mxu0
        %662 = vdwg.mxu0
        %663 = vmatprep.subr.bf16.mxu0 0
        %664 = vmatpush1.bf16.msra.mxu0 %v582
        %665 = vmatprep.subr.bf16.mxu0 0
        %666 = vmatpush1.bf16.msra.mxu0 %v583
        %667 = vmatprep.subr.bf16.mxu0 0
        %668 = vmatpush1.bf16.msra.mxu0 %v584
        %669 = vmatprep.subr.bf16.mxu0 0
        %670 = vmatpush1.bf16.msra.mxu0 %v585
        %671 = vmatprep.subr.bf16.mxu0 0
        %672 = vmatpush1.bf16.msra.mxu0 %v586
        %673 = vmatprep.subr.bf16.mxu0 0
        %674 = vmatpush1.bf16.msra.mxu0 %v587
        %675 = vmatprep.subr.bf16.mxu0 0
        %676 = vmatpush1.bf16.msra.mxu0 %v588
        %677 = vmatprep.subr.bf16.mxu0 0
        %678 = vmatpush1.bf16.msra.mxu0 %v589
        %679 = vmatprep.subr.bf16.mxu0 0
        %680 = vmatpush1.bf16.msra.mxu0 0
        %681 = vmatprep.subr.bf16.mxu0 0
        %682 = vmatpush1.bf16.msra.mxu0 0
        %683 = vmatprep.subr.bf16.mxu0 0
        %684 = vmatpush1.bf16.msra.mxu0 0
        %685 = vmatprep.subr.bf16.mxu0 0
        %686 = vmatpush1.bf16.msra.mxu0 0
        %687 = vmatprep.subr.bf16.mxu0 0
        %688 = vmatpush1.bf16.msra.mxu0 0
        %689 = vmatprep.subr.bf16.mxu0 0
        %690 = vmatpush1.bf16.msra.mxu0 0
        %691 = vmatprep.subr.bf16.mxu0 0
        %692 = vmatpush1.bf16.msra.mxu0 0
        %693 = vmatprep.subr.bf16.mxu0 0
        %694 = vmatpush1.bf16.msra.mxu0 0
        %695 = vmatprep.mubr.bf16.mxu0 0
        %696 = vmatmul.mubr.bf16.gmra.mrb[0].mxu0 %v462
        %v697 = vpop.f32.mrb[0].mxu0
        %v698 = vadd.f32 %v649, %v697
        %v699 = vpop.f32.mrb[0].mxu0
        %v700 = vpop.f32.mrb[0].mxu0
        %v701 = vadd.f32 %v652, %v700
        %v702 = vpop.f32.mrb[0].mxu0
        %703 = vmatprep.mubr.bf16.mxu0 0
        %704 = vmatmul.mubr.bf16.gmra.mrb[0].mxu0 %v463
        %v705 = vpop.f32.mrb[0].mxu0
        %v706 = vadd.f32 %v657, %v705
        %v707 = vpop.f32.mrb[0].mxu0
        %v708 = vpop.f32.mrb[0].mxu0
        %v709 = vadd.f32 %v660, %v708
        %v710 = vpop.f32.mrb[0].mxu0
        %711 = vdwg.mxu0
        %v712 = vmul.f32 %v698, 0.01
        %v713 = vmul.f32 %v701, 0.01
        %v714 = vmul.f32 %v706, 0.01
        %v715 = vmul.f32 %v709, 0.01
        %v716 = vmax.f32 %v698, %v712
        %v717 = vmax.f32 %v701, %v713
        %v718 = vmax.f32 %v706, %v714
        %v719 = vmax.f32 %v709, %v715
        loop: start=0, step=1, limit=8
        $region61: #{pitch_predictor_pallas.1} parent=55 // loop_pre_header
          _
        $region62: #{pitch_predictor_pallas.1} parent=55 // loop_header
          %s721 = sphi 0, %s725
          %p722 = scmp.ge.s32.totalorder %s721, 8
          %v726 = vphi %v716, %v1065
          %v727 = vphi %v717, %v1066
          %v728 = vphi %v718, %v1067
          %v729 = vphi %v719, %v1068
        $region63: #{pitch_predictor_pallas.1} parent=55 // loop_header_branch
          %724 = sbr.rel (%p722) target = $region67
        $region64: #{pitch_predictor_pallas.1} parent=55 // loop_body
          %s730 = smul.u32 %s721, 48
          %s731 = smul.addr %s730, 4
          %s732 = scalar_lea.vmem [#allocation2], %s731
          %v733 = vld [vmem:[%s732] sm:$0xf]
          %v734 = vld [vmem:[%s732 + $0x4] sm:$0xf]
          %v735 = vld [vmem:[%s732 + $0x8] sm:$0xf]
          %v736 = vld [vmem:[%s732 + $0xc] sm:$0xf]
          %v737 = vld [vmem:[%s732 + $0x10] sm:$0xf]
          %v738 = vld [vmem:[%s732 + $0x14] sm:$0xf]
          %v739 = vld [vmem:[%s732 + $0x18] sm:$0xf]
          %v740 = vld [vmem:[%s732 + $0x1c] sm:$0xf]
          %v741 = vld [vmem:[%s732 + $0x20] sm:$0xf]
          %v742 = vld [vmem:[%s732 + $0x24] sm:$0xf]
          %v743 = vld [vmem:[%s732 + $0x28] sm:$0xf]
          %v744 = vld [vmem:[%s732 + $0x2c] sm:$0xf]
          %v745 = vld [vmem:[%s732 + $0x30] sm:$0xf]
          %v746 = vld [vmem:[%s732 + $0x34] sm:$0xf]
          %v747 = vld [vmem:[%s732 + $0x38] sm:$0xf]
          %v748 = vld [vmem:[%s732 + $0x3c] sm:$0xf]
          %v749 = vld [vmem:[%s732 + $0x40] sm:$0xf]
          %v750 = vld [vmem:[%s732 + $0x44] sm:$0xf]
          %v751 = vld [vmem:[%s732 + $0x48] sm:$0xf]
          %v752 = vld [vmem:[%s732 + $0x4c] sm:$0xf]
          %v753 = vld [vmem:[%s732 + $0x50] sm:$0xf]
          %v754 = vld [vmem:[%s732 + $0x54] sm:$0xf]
          %v755 = vld [vmem:[%s732 + $0x58] sm:$0xf]
          %v756 = vld [vmem:[%s732 + $0x5c] sm:$0xf]
          %v757 = vld [vmem:[%s732 + $0x60] sm:$0xf]
          %v758 = vld [vmem:[%s732 + $0x64] sm:$0xf]
          %v759 = vld [vmem:[%s732 + $0x68] sm:$0xf]
          %v760 = vld [vmem:[%s732 + $0x6c] sm:$0xf]
          %v761 = vld [vmem:[%s732 + $0x70] sm:$0xf]
          %v762 = vld [vmem:[%s732 + $0x74] sm:$0xf]
          %v763 = vld [vmem:[%s732 + $0x78] sm:$0xf]
          %v764 = vld [vmem:[%s732 + $0x7c] sm:$0xf]
          %v765 = vld [vmem:[%s732 + $0x80] sm:$0xf]
          %v766 = vld [vmem:[%s732 + $0x84] sm:$0xf]
          %v767 = vld [vmem:[%s732 + $0x88] sm:$0xf]
          %v768 = vld [vmem:[%s732 + $0x8c] sm:$0xf]
          %v769 = vld [vmem:[%s732 + $0x90] sm:$0xf]
          %v770 = vld [vmem:[%s732 + $0x94] sm:$0xf]
          %v771 = vld [vmem:[%s732 + $0x98] sm:$0xf]
          %v772 = vld [vmem:[%s732 + $0x9c] sm:$0xf]
          %v773 = vld [vmem:[%s732 + $0xa0] sm:$0xf]
          %v774 = vld [vmem:[%s732 + $0xa4] sm:$0xf]
          %v775 = vld [vmem:[%s732 + $0xa8] sm:$0xf]
          %v776 = vld [vmem:[%s732 + $0xac] sm:$0xf]
          %v777 = vld [vmem:[%s732 + $0xb0] sm:$0xf]
          %v778 = vld [vmem:[%s732 + $0xb4] sm:$0xf]
          %v779 = vld [vmem:[%s732 + $0xb8] sm:$0xf]
          %v780 = vld [vmem:[%s732 + $0xbc] sm:$0xf]
          %s781 = scalar_lea.vmem %s4, %s721
          %v782 = vld [vmem:[%s781] sm:$0x1]
          %v783 = vrot.slane %v726, 7
          %v784 = vrot.slane %v727, 7
          %v785 = vrot.slane %v728, 7
          %v786 = vrot.slane %v729, 7
          %v787 = vsel %vm416, %v785, %v786
          %v788 = vsel %vm416, %v784, %v785
          %v789 = vsel %vm416, %v783, %v784
          %v790 = vsel %vm416, %v786, %v783
          %v791 = vsel %vm429, %v790, 0.0
          %v792 = vsel %vm430, %v789, 0.0
          %v793 = vsel %vm429, %v788, 0.0
          %v794 = vsel %vm430, %v787, 0.0
          %v795 = vrot.slane %v726, 1
          %v796 = vrot.slane %v727, 1
          %v797 = vrot.slane %v728, 1
          %v798 = vrot.slane %v729, 1
          %v799 = vsel %vm439, %v797, %v798
          %v800 = vsel %vm439, %v796, %v797
          %v801 = vsel %vm439, %v795, %v796
          %v802 = vsel %vm439, %v798, %v795
          %v803 = vsel %vm452, %v801, 0.0
          %v804 = vsel %vm453, %v800, 0.0
          %v805 = vsel %vm452, %v799, 0.0
          %v806 = vsel %vm453, %v802, 0.0
          %v807 = vpack.c.bf16 %v792, %v791
          %v808 = vpack.c.bf16 %v794, %v793
          %v809 = vpack.c.bf16 %v727, %v726
          %v810 = vpack.c.bf16 %v729, %v728
          %v811 = vpack.c.bf16 %v804, %v803
          %v812 = vpack.c.bf16 %v806, %v805
          %v814 = vlaneseq
          %v815 = vshrl.u32 %v814, 7
          %v816 = vsub.s32 0, %v815
          %v817 = vrot.slane %v782, %v816
          %v867 = vunpack.c.l.b16 %v733
          %v868 = vunpack.c.l.b16 %v734
          %v869 = vunpack.c.l.b16 %v735
          %v870 = vunpack.c.l.b16 %v736
          %v871 = vunpack.c.l.b16 %v737
          %v872 = vunpack.c.l.b16 %v738
          %v873 = vunpack.c.l.b16 %v739
          %v874 = vunpack.c.l.b16 %v740
          %v875 = vunpack.c.l.b16 %v741
          %v876 = vunpack.c.l.b16 %v742
          %v877 = vunpack.c.l.b16 %v743
          %v878 = vunpack.c.l.b16 %v744
          %v879 = vunpack.c.l.b16 %v745
          %v880 = vunpack.c.l.b16 %v746
          %v881 = vunpack.c.l.b16 %v747
          %v882 = vunpack.c.l.b16 %v748
          %v883 = vunpack.c.l.b16 %v749
          %v884 = vunpack.c.l.b16 %v750
          %v885 = vunpack.c.l.b16 %v751
          %v886 = vunpack.c.l.b16 %v752
          %v887 = vunpack.c.l.b16 %v753
          %v888 = vunpack.c.l.b16 %v754
          %v889 = vunpack.c.l.b16 %v755
          %v890 = vunpack.c.l.b16 %v756
          %v891 = vunpack.c.l.b16 %v757
          %v892 = vunpack.c.l.b16 %v758
          %v893 = vunpack.c.l.b16 %v759
          %v894 = vunpack.c.l.b16 %v760
          %v895 = vunpack.c.l.b16 %v761
          %v896 = vunpack.c.l.b16 %v762
          %v897 = vunpack.c.l.b16 %v763
          %v898 = vunpack.c.l.b16 %v764
          %v899 = vunpack.c.l.b16 %v765
          %v900 = vunpack.c.l.b16 %v766
          %v901 = vunpack.c.l.b16 %v767
          %v902 = vunpack.c.l.b16 %v768
          %v903 = vunpack.c.l.b16 %v769
          %v904 = vunpack.c.l.b16 %v770
          %v905 = vunpack.c.l.b16 %v771
          %v906 = vunpack.c.l.b16 %v772
          %v907 = vunpack.c.l.b16 %v773
          %v908 = vunpack.c.l.b16 %v774
          %v909 = vunpack.c.l.b16 %v775
          %v910 = vunpack.c.l.b16 %v776
          %v911 = vunpack.c.l.b16 %v777
          %v912 = vunpack.c.l.b16 %v778
          %v913 = vunpack.c.l.b16 %v779
          %v914 = vunpack.c.l.b16 %v780
          %v915 = vpack.c.b16 %v868, %v867
          %v916 = vpack.c.b16 %v870, %v869
          %v917 = vpack.c.b16 %v872, %v871
          %v918 = vpack.c.b16 %v874, %v873
          %v919 = vpack.c.b16 %v876, %v875
          %v920 = vpack.c.b16 %v878, %v877
          %v921 = vpack.c.b16 %v880, %v879
          %v922 = vpack.c.b16 %v882, %v881
          %v923 = vpack.c.b16 %v884, %v883
          %v924 = vpack.c.b16 %v886, %v885
          %v925 = vpack.c.b16 %v888, %v887
          %v926 = vpack.c.b16 %v890, %v889
          %v927 = vpack.c.b16 %v892, %v891
          %v928 = vpack.c.b16 %v894, %v893
          %v929 = vpack.c.b16 %v896, %v895
          %v930 = vpack.c.b16 %v898, %v897
          %v931 = vpack.c.b16 %v900, %v899
          %v932 = vpack.c.b16 %v902, %v901
          %v933 = vpack.c.b16 %v904, %v903
          %v934 = vpack.c.b16 %v906, %v905
          %v935 = vpack.c.b16 %v908, %v907
          %v936 = vpack.c.b16 %v910, %v909
          %v937 = vpack.c.b16 %v912, %v911
          %v938 = vpack.c.b16 %v914, %v913
          %963 = vmatprep.subr.bf16.mxu0 0
          %964 = vmatpush1.bf16.msra.mxu0 %v915
          %965 = vmatprep.subr.bf16.mxu0 0
          %966 = vmatpush1.bf16.msra.mxu0 %v916
          %967 = vmatprep.subr.bf16.mxu0 0
          %968 = vmatpush1.bf16.msra.mxu0 %v917
          %969 = vmatprep.subr.bf16.mxu0 0
          %970 = vmatpush1.bf16.msra.mxu0 %v918
          %971 = vmatprep.subr.bf16.mxu0 0
          %972 = vmatpush1.bf16.msra.mxu0 %v919
          %973 = vmatprep.subr.bf16.mxu0 0
          %974 = vmatpush1.bf16.msra.mxu0 %v920
          %975 = vmatprep.subr.bf16.mxu0 0
          %976 = vmatpush1.bf16.msra.mxu0 %v921
          %977 = vmatprep.subr.bf16.mxu0 0
          %978 = vmatpush1.bf16.msra.mxu0 %v922
          %979 = vmatprep.subr.bf16.mxu0 0
          %980 = vmatpush1.bf16.msra.mxu0 %v923
          %981 = vmatprep.subr.bf16.mxu0 0
          %982 = vmatpush1.bf16.msra.mxu0 %v924
          %983 = vmatprep.subr.bf16.mxu0 0
          %984 = vmatpush1.bf16.msra.mxu0 %v925
          %985 = vmatprep.subr.bf16.mxu0 0
          %986 = vmatpush1.bf16.msra.mxu0 %v926
          %987 = vmatprep.subr.bf16.mxu0 0
          %988 = vmatpush1.bf16.msra.mxu0 %v927
          %989 = vmatprep.subr.bf16.mxu0 0
          %990 = vmatpush1.bf16.msra.mxu0 %v928
          %991 = vmatprep.subr.bf16.mxu0 0
          %992 = vmatpush1.bf16.msra.mxu0 %v929
          %993 = vmatprep.subr.bf16.mxu0 0
          %994 = vmatpush1.bf16.msra.mxu0 %v930
          %995 = vmatprep.mubr.bf16.mxu0 %v809
          %996 = vmatmul.mubr.bf16.gmra.mrb[0].mxu0 %v807
          %v997 = vpop.f32.mrb[0].mxu0
          %v998 = vadd.f32 %v817, %v997
          %v999 = vpop.f32.mrb[0].mxu0
          %v1000 = vpop.f32.mrb[0].mxu0
          %v1001 = vadd.f32 %v817, %v1000
          %v1002 = vpop.f32.mrb[0].mxu0
          %1003 = vmatprep.mubr.bf16.mxu0 %v810
          %1004 = vmatmul.mubr.bf16.gmra.mrb[0].mxu0 %v808
          %v1005 = vpop.f32.mrb[0].mxu0
          %v1006 = vadd.f32 %v817, %v1005
          %v1007 = vpop.f32.mrb[0].mxu0
          %v1008 = vpop.f32.mrb[0].mxu0
          %v1009 = vadd.f32 %v817, %v1008
          %v1010 = vpop.f32.mrb[0].mxu0
          %1011 = vdwg.mxu0
          %1012 = vmatprep.subr.bf16.mxu0 0
          %1013 = vmatpush1.bf16.msra.mxu0 %v931
          %1014 = vmatprep.subr.bf16.mxu0 0
          %1015 = vmatpush1.bf16.msra.mxu0 %v932
          %1016 = vmatprep.subr.bf16.mxu0 0
          %1017 = vmatpush1.bf16.msra.mxu0 %v933
          %1018 = vmatprep.subr.bf16.mxu0 0
          %1019 = vmatpush1.bf16.msra.mxu0 %v934
          %1020 = vmatprep.subr.bf16.mxu0 0
          %1021 = vmatpush1.bf16.msra.mxu0 %v935
          %1022 = vmatprep.subr.bf16.mxu0 0
          %1023 = vmatpush1.bf16.msra.mxu0 %v936
          %1024 = vmatprep.subr.bf16.mxu0 0
          %1025 = vmatpush1.bf16.msra.mxu0 %v937
          %1026 = vmatprep.subr.bf16.mxu0 0
          %1027 = vmatpush1.bf16.msra.mxu0 %v938
          %1028 = vmatprep.subr.bf16.mxu0 0
          %1029 = vmatpush1.bf16.msra.mxu0 0
          %1030 = vmatprep.subr.bf16.mxu0 0
          %1031 = vmatpush1.bf16.msra.mxu0 0
          %1032 = vmatprep.subr.bf16.mxu0 0
          %1033 = vmatpush1.bf16.msra.mxu0 0
          %1034 = vmatprep.subr.bf16.mxu0 0
          %1035 = vmatpush1.bf16.msra.mxu0 0
          %1036 = vmatprep.subr.bf16.mxu0 0
          %1037 = vmatpush1.bf16.msra.mxu0 0
          %1038 = vmatprep.subr.bf16.mxu0 0
          %1039 = vmatpush1.bf16.msra.mxu0 0
          %1040 = vmatprep.subr.bf16.mxu0 0
          %1041 = vmatpush1.bf16.msra.mxu0 0
          %1042 = vmatprep.subr.bf16.mxu0 0
          %1043 = vmatpush1.bf16.msra.mxu0 0
          %1044 = vmatprep.mubr.bf16.mxu0 0
          %1045 = vmatmul.mubr.bf16.gmra.mrb[0].mxu0 %v811
          %v1046 = vpop.f32.mrb[0].mxu0
          %v1047 = vadd.f32 %v998, %v1046
          %v1048 = vpop.f32.mrb[0].mxu0
          %v1049 = vpop.f32.mrb[0].mxu0
          %v1050 = vadd.f32 %v1001, %v1049
          %v1051 = vpop.f32.mrb[0].mxu0
          %1052 = vmatprep.mubr.bf16.mxu0 0
          %1053 = vmatmul.mubr.bf16.gmra.mrb[0].mxu0 %v812
          %v1054 = vpop.f32.mrb[0].mxu0
          %v1055 = vadd.f32 %v1006, %v1054
          %v1056 = vpop.f32.mrb[0].mxu0
          %v1057 = vpop.f32.mrb[0].mxu0
          %v1058 = vadd.f32 %v1009, %v1057
          %v1059 = vpop.f32.mrb[0].mxu0
          %1060 = vdwg.mxu0
          %v1061 = vmul.f32 %v1047, 0.01
          %v1062 = vmul.f32 %v1050, 0.01
          %v1063 = vmul.f32 %v1055, 0.01
          %v1064 = vmul.f32 %v1058, 0.01
          %v1065 = vmax.f32 %v1047, %v1061
          %v1066 = vmax.f32 %v1050, %v1062
          %v1067 = vmax.f32 %v1055, %v1063
          %v1068 = vmax.f32 %v1058, %v1064
        $region65: #{pitch_predictor_pallas.1} parent=55 // loop_footer
          %s725 = sadd.s32 1, %s721
        $region66: #{pitch_predictor_pallas.1} parent=55 // loop_footer_branch
          %720 = sbr.rel target = $region62
        $region67: #{pitch_predictor_pallas.1} parent=55 // loop_exit
          _
        %v1069 = vld [vmem:[%s5] sm:$0xff]
        %v1070 = vld [vmem:[%s5 + $0x8] sm:$0xff]
        %v1071 = vld [vmem:[%s5 + $0x10] sm:$0xff]
        %v1072 = vld [vmem:[%s5 + $0x18] sm:$0xff]
        %v1073 = vld [vmem:[%s5 + $0x20] sm:$0xff]
        %v1074 = vld [vmem:[%s5 + $0x28] sm:$0xff]
        %v1075 = vld [vmem:[%s5 + $0x30] sm:$0xff]
        %v1076 = vld [vmem:[%s5 + $0x38] sm:$0xff]
        %v1077 = vld [vmem:[%s5 + $0x40] sm:$0xff]
        %v1078 = vld [vmem:[%s5 + $0x48] sm:$0xff]
        %v1079 = vld [vmem:[%s5 + $0x50] sm:$0xff]
        %v1080 = vld [vmem:[%s5 + $0x58] sm:$0xff]
        %v1081 = vld [vmem:[%s5 + $0x60] sm:$0xff]
        %v1082 = vld [vmem:[%s5 + $0x68] sm:$0xff]
        %v1083 = vld [vmem:[%s5 + $0x70] sm:$0xff]
        %v1084 = vld [vmem:[%s5 + $0x78] sm:$0xff]
        %v1085 = vld [vmem:[%s5 + $0x80] sm:$0xff]
        %v1086 = vld [vmem:[%s5 + $0x88] sm:$0xff]
        %v1087 = vld [vmem:[%s5 + $0x90] sm:$0xff]
        %v1088 = vld [vmem:[%s5 + $0x98] sm:$0xff]
        %v1089 = vld [vmem:[%s5 + $0xa0] sm:$0xff]
        %v1090 = vld [vmem:[%s5 + $0xa8] sm:$0xff]
        %v1091 = vld [vmem:[%s5 + $0xb0] sm:$0xff]
        %v1092 = vld [vmem:[%s5 + $0xb8] sm:$0xff]
        %v1093 = vld [vmem:[%s5 + $0xc0] sm:$0xff]
        %v1094 = vld [vmem:[%s5 + $0xc8] sm:$0xff]
        %v1095 = vld [vmem:[%s5 + $0xd0] sm:$0xff]
        %v1096 = vld [vmem:[%s5 + $0xd8] sm:$0xff]
        %v1097 = vld [vmem:[%s5 + $0xe0] sm:$0xff]
        %v1098 = vld [vmem:[%s5 + $0xe8] sm:$0xff]
        %v1099 = vld [vmem:[%s5 + $0xf0] sm:$0xff]
        %v1100 = vld [vmem:[%s5 + $0xf8] sm:$0xff]
        %v1101 = vld [vmem:[%s5 + $0x100] sm:$0xff]
        %v1102 = vld [vmem:[%s5 + $0x108] sm:$0xff]
        %v1103 = vld [vmem:[%s5 + $0x110] sm:$0xff]
        %v1104 = vld [vmem:[%s5 + $0x118] sm:$0xff]
        %v1105 = vld [vmem:[%s5 + $0x120] sm:$0xff]
        %v1106 = vld [vmem:[%s5 + $0x128] sm:$0xff]
        %v1107 = vld [vmem:[%s5 + $0x130] sm:$0xff]
        %v1108 = vld [vmem:[%s5 + $0x138] sm:$0xff]
        %v1109 = vld [vmem:[%s5 + $0x140] sm:$0xff]
        %v1110 = vld [vmem:[%s5 + $0x148] sm:$0xff]
        %v1111 = vld [vmem:[%s5 + $0x150] sm:$0xff]
        %v1112 = vld [vmem:[%s5 + $0x158] sm:$0xff]
        %v1113 = vld [vmem:[%s5 + $0x160] sm:$0xff]
        %v1114 = vld [vmem:[%s5 + $0x168] sm:$0xff]
        %v1115 = vld [vmem:[%s5 + $0x170] sm:$0xff]
        %v1116 = vld [vmem:[%s5 + $0x178] sm:$0xff]
        %v1117 = vld [vmem:[%s6] sm:$0x3]
        %v1118 = vrot.slane %v726, 7
        %v1119 = vrot.slane %v727, 7
        %v1120 = vrot.slane %v728, 7
        %v1121 = vrot.slane %v729, 7
        %v1122 = vsel %vm416, %v1120, %v1121
        %v1123 = vsel %vm416, %v1119, %v1120
        %v1124 = vsel %vm416, %v1118, %v1119
        %v1125 = vsel %vm416, %v1121, %v1118
        %v1126 = vsel %vm429, %v1125, 0.0
        %v1127 = vsel %vm430, %v1124, 0.0
        %v1128 = vsel %vm429, %v1123, 0.0
        %v1129 = vsel %vm430, %v1122, 0.0
        %v1130 = vrot.slane %v726, 1
        %v1131 = vrot.slane %v727, 1
        %v1132 = vrot.slane %v728, 1
        %v1133 = vrot.slane %v729, 1
        %v1134 = vsel %vm439, %v1132, %v1133
        %v1135 = vsel %vm439, %v1131, %v1132
        %v1136 = vsel %vm439, %v1130, %v1131
        %v1137 = vsel %vm439, %v1133, %v1130
        %v1138 = vsel %vm452, %v1136, 0.0
        %v1139 = vsel %vm453, %v1135, 0.0
        %v1140 = vsel %vm452, %v1134, 0.0
        %v1141 = vsel %vm453, %v1137, 0.0
        %v1142 = vpack.c.bf16 %v1127, %v1126
        %v1143 = vpack.c.bf16 %v1129, %v1128
        %v1144 = vpack.c.bf16 %v727, %v726
        %v1145 = vpack.c.bf16 %v729, %v728
        %v1146 = vpack.c.bf16 %v1139, %v1138
        %v1147 = vpack.c.bf16 %v1141, %v1140
        %v1149 = vlaneseq
        %v1150 = vshrl.u32 %v1149, 7
        %v1151 = vsub.s32 0, %v1150
        %v1152 = vrot.slane %v1117, %v1151
        %v1153 = vlaneseq
        %v1154 = vshrl.u32 %v1153, 7
        %v1155 = vsub.s32 1, %v1154
        %v1156 = vrot.slane %v1117, %v1155
        %v1207 = vunpack.c.l.b16 %v1069
        %v1208 = vunpack.c.h.b16 %v1069
        %v1209 = vunpack.c.l.b16 %v1070
        %v1210 = vunpack.c.h.b16 %v1070
        %v1211 = vunpack.c.l.b16 %v1071
        %v1212 = vunpack.c.h.b16 %v1071
        %v1213 = vunpack.c.l.b16 %v1072
        %v1214 = vunpack.c.h.b16 %v1072
        %v1215 = vunpack.c.l.b16 %v1073
        %v1216 = vunpack.c.h.b16 %v1073
        %v1217 = vunpack.c.l.b16 %v1074
        %v1218 = vunpack.c.h.b16 %v1074
        %v1219 = vunpack.c.l.b16 %v1075
        %v1220 = vunpack.c.h.b16 %v1075
        %v1221 = vunpack.c.l.b16 %v1076
        %v1222 = vunpack.c.h.b16 %v1076
        %v1223 = vunpack.c.l.b16 %v1077
        %v1224 = vunpack.c.h.b16 %v1077
        %v1225 = vunpack.c.l.b16 %v1078
        %v1226 = vunpack.c.h.b16 %v1078
        %v1227 = vunpack.c.l.b16 %v1079
        %v1228 = vunpack.c.h.b16 %v1079
        %v1229 = vunpack.c.l.b16 %v1080
        %v1230 = vunpack.c.h.b16 %v1080
        %v1231 = vunpack.c.l.b16 %v1081
        %v1232 = vunpack.c.h.b16 %v1081
        %v1233 = vunpack.c.l.b16 %v1082
        %v1234 = vunpack.c.h.b16 %v1082
        %v1235 = vunpack.c.l.b16 %v1083
        %v1236 = vunpack.c.h.b16 %v1083
        %v1237 = vunpack.c.l.b16 %v1084
        %v1238 = vunpack.c.h.b16 %v1084
        %v1239 = vunpack.c.l.b16 %v1085
        %v1240 = vunpack.c.h.b16 %v1085
        %v1241 = vunpack.c.l.b16 %v1086
        %v1242 = vunpack.c.h.b16 %v1086
        %v1243 = vunpack.c.l.b16 %v1087
        %v1244 = vunpack.c.h.b16 %v1087
        %v1245 = vunpack.c.l.b16 %v1088
        %v1246 = vunpack.c.h.b16 %v1088
        %v1247 = vunpack.c.l.b16 %v1089
        %v1248 = vunpack.c.h.b16 %v1089
        %v1249 = vunpack.c.l.b16 %v1090
        %v1250 = vunpack.c.h.b16 %v1090
        %v1251 = vunpack.c.l.b16 %v1091
        %v1252 = vunpack.c.h.b16 %v1091
        %v1253 = vunpack.c.l.b16 %v1092
        %v1254 = vunpack.c.h.b16 %v1092
        %v1255 = vunpack.c.l.b16 %v1093
        %v1256 = vunpack.c.h.b16 %v1093
        %v1257 = vunpack.c.l.b16 %v1094
        %v1258 = vunpack.c.h.b16 %v1094
        %v1259 = vunpack.c.l.b16 %v1095
        %v1260 = vunpack.c.h.b16 %v1095
        %v1261 = vunpack.c.l.b16 %v1096
        %v1262 = vunpack.c.h.b16 %v1096
        %v1263 = vunpack.c.l.b16 %v1097
        %v1264 = vunpack.c.h.b16 %v1097
        %v1265 = vunpack.c.l.b16 %v1098
        %v1266 = vunpack.c.h.b16 %v1098
        %v1267 = vunpack.c.l.b16 %v1099
        %v1268 = vunpack.c.h.b16 %v1099
        %v1269 = vunpack.c.l.b16 %v1100
        %v1270 = vunpack.c.h.b16 %v1100
        %v1271 = vunpack.c.l.b16 %v1101
        %v1272 = vunpack.c.h.b16 %v1101
        %v1273 = vunpack.c.l.b16 %v1102
        %v1274 = vunpack.c.h.b16 %v1102
        %v1275 = vunpack.c.l.b16 %v1103
        %v1276 = vunpack.c.h.b16 %v1103
        %v1277 = vunpack.c.l.b16 %v1104
        %v1278 = vunpack.c.h.b16 %v1104
        %v1279 = vunpack.c.l.b16 %v1105
        %v1280 = vunpack.c.h.b16 %v1105
        %v1281 = vunpack.c.l.b16 %v1106
        %v1282 = vunpack.c.h.b16 %v1106
        %v1283 = vunpack.c.l.b16 %v1107
        %v1284 = vunpack.c.h.b16 %v1107
        %v1285 = vunpack.c.l.b16 %v1108
        %v1286 = vunpack.c.h.b16 %v1108
        %v1287 = vunpack.c.l.b16 %v1109
        %v1288 = vunpack.c.h.b16 %v1109
        %v1289 = vunpack.c.l.b16 %v1110
        %v1290 = vunpack.c.h.b16 %v1110
        %v1291 = vunpack.c.l.b16 %v1111
        %v1292 = vunpack.c.h.b16 %v1111
        %v1293 = vunpack.c.l.b16 %v1112
        %v1294 = vunpack.c.h.b16 %v1112
        %v1295 = vunpack.c.l.b16 %v1113
        %v1296 = vunpack.c.h.b16 %v1113
        %v1297 = vunpack.c.l.b16 %v1114
        %v1298 = vunpack.c.h.b16 %v1114
        %v1299 = vunpack.c.l.b16 %v1115
        %v1300 = vunpack.c.h.b16 %v1115
        %v1301 = vunpack.c.l.b16 %v1116
        %v1302 = vunpack.c.h.b16 %v1116
        %v1303 = vpack.c.b16 %v1209, %v1207
        %v1304 = vpack.c.b16 %v1210, %v1208
        %v1305 = vpack.c.b16 %v1213, %v1211
        %v1306 = vpack.c.b16 %v1214, %v1212
        %v1307 = vpack.c.b16 %v1217, %v1215
        %v1308 = vpack.c.b16 %v1218, %v1216
        %v1309 = vpack.c.b16 %v1221, %v1219
        %v1310 = vpack.c.b16 %v1222, %v1220
        %v1311 = vpack.c.b16 %v1225, %v1223
        %v1312 = vpack.c.b16 %v1226, %v1224
        %v1313 = vpack.c.b16 %v1229, %v1227
        %v1314 = vpack.c.b16 %v1230, %v1228
        %v1315 = vpack.c.b16 %v1233, %v1231
        %v1316 = vpack.c.b16 %v1234, %v1232
        %v1317 = vpack.c.b16 %v1237, %v1235
        %v1318 = vpack.c.b16 %v1238, %v1236
        %v1319 = vpack.c.b16 %v1241, %v1239
        %v1320 = vpack.c.b16 %v1242, %v1240
        %v1321 = vpack.c.b16 %v1245, %v1243
        %v1322 = vpack.c.b16 %v1246, %v1244
        %v1323 = vpack.c.b16 %v1249, %v1247
        %v1324 = vpack.c.b16 %v1250, %v1248
        %v1325 = vpack.c.b16 %v1253, %v1251
        %v1326 = vpack.c.b16 %v1254, %v1252
        %v1327 = vpack.c.b16 %v1257, %v1255
        %v1328 = vpack.c.b16 %v1258, %v1256
        %v1329 = vpack.c.b16 %v1261, %v1259
        %v1330 = vpack.c.b16 %v1262, %v1260
        %v1331 = vpack.c.b16 %v1265, %v1263
        %v1332 = vpack.c.b16 %v1266, %v1264
        %v1333 = vpack.c.b16 %v1269, %v1267
        %v1334 = vpack.c.b16 %v1270, %v1268
        %v1335 = vpack.c.b16 %v1273, %v1271
        %v1336 = vpack.c.b16 %v1274, %v1272
        %v1337 = vpack.c.b16 %v1277, %v1275
        %v1338 = vpack.c.b16 %v1278, %v1276
        %v1339 = vpack.c.b16 %v1281, %v1279
        %v1340 = vpack.c.b16 %v1282, %v1280
        %v1341 = vpack.c.b16 %v1285, %v1283
        %v1342 = vpack.c.b16 %v1286, %v1284
        %v1343 = vpack.c.b16 %v1289, %v1287
        %v1344 = vpack.c.b16 %v1290, %v1288
        %v1345 = vpack.c.b16 %v1293, %v1291
        %v1346 = vpack.c.b16 %v1294, %v1292
        %v1347 = vpack.c.b16 %v1297, %v1295
        %v1348 = vpack.c.b16 %v1298, %v1296
        %v1349 = vpack.c.b16 %v1301, %v1299
        %v1350 = vpack.c.b16 %v1302, %v1300
        %1399 = vmatprep.subr.bf16.mxu0 %v1304
        %1400 = vmatpush1.bf16.msra.mxu0 %v1303
        %1401 = vmatprep.subr.bf16.mxu0 %v1306
        %1402 = vmatpush1.bf16.msra.mxu0 %v1305
        %1403 = vmatprep.subr.bf16.mxu0 %v1308
        %1404 = vmatpush1.bf16.msra.mxu0 %v1307
        %1405 = vmatprep.subr.bf16.mxu0 %v1310
        %1406 = vmatpush1.bf16.msra.mxu0 %v1309
        %1407 = vmatprep.subr.bf16.mxu0 %v1312
        %1408 = vmatpush1.bf16.msra.mxu0 %v1311
        %1409 = vmatprep.subr.bf16.mxu0 %v1314
        %1410 = vmatpush1.bf16.msra.mxu0 %v1313
        %1411 = vmatprep.subr.bf16.mxu0 %v1316
        %1412 = vmatpush1.bf16.msra.mxu0 %v1315
        %1413 = vmatprep.subr.bf16.mxu0 %v1318
        %1414 = vmatpush1.bf16.msra.mxu0 %v1317
        %1415 = vmatprep.subr.bf16.mxu0 %v1320
        %1416 = vmatpush1.bf16.msra.mxu0 %v1319
        %1417 = vmatprep.subr.bf16.mxu0 %v1322
        %1418 = vmatpush1.bf16.msra.mxu0 %v1321
        %1419 = vmatprep.subr.bf16.mxu0 %v1324
        %1420 = vmatpush1.bf16.msra.mxu0 %v1323
        %1421 = vmatprep.subr.bf16.mxu0 %v1326
        %1422 = vmatpush1.bf16.msra.mxu0 %v1325
        %1423 = vmatprep.subr.bf16.mxu0 %v1328
        %1424 = vmatpush1.bf16.msra.mxu0 %v1327
        %1425 = vmatprep.subr.bf16.mxu0 %v1330
        %1426 = vmatpush1.bf16.msra.mxu0 %v1329
        %1427 = vmatprep.subr.bf16.mxu0 %v1332
        %1428 = vmatpush1.bf16.msra.mxu0 %v1331
        %1429 = vmatprep.subr.bf16.mxu0 %v1334
        %1430 = vmatpush1.bf16.msra.mxu0 %v1333
        %1431 = vmatprep.mubr.bf16.mxu0 %v1144
        %1432 = vmatmul.mubr.bf16.gmra.mrb[0].mxu0 %v1142
        %v1433 = vpop.f32.mrb[0].mxu0
        %v1434 = vadd.f32 %v1152, %v1433
        %v1435 = vpop.f32.mrb[0].mxu0
        %v1436 = vadd.f32 %v1156, %v1435
        %v1437 = vpop.f32.mrb[0].mxu0
        %v1438 = vadd.f32 %v1152, %v1437
        %v1439 = vpop.f32.mrb[0].mxu0
        %v1440 = vadd.f32 %v1156, %v1439
        %1441 = vmatprep.mubr.bf16.mxu0 %v1145
        %1442 = vmatmul.mubr.bf16.gmra.mrb[0].mxu0 %v1143
        %v1443 = vpop.f32.mrb[0].mxu0
        %v1444 = vadd.f32 %v1152, %v1443
        %v1445 = vpop.f32.mrb[0].mxu0
        %v1446 = vadd.f32 %v1156, %v1445
        %v1447 = vpop.f32.mrb[0].mxu0
        %v1448 = vadd.f32 %v1152, %v1447
        %v1449 = vpop.f32.mrb[0].mxu0
        %v1450 = vadd.f32 %v1156, %v1449
        %1451 = vdwg.mxu0
        %1452 = vmatprep.subr.bf16.mxu0 %v1336
        %1453 = vmatpush1.bf16.msra.mxu0 %v1335
        %1454 = vmatprep.subr.bf16.mxu0 %v1338
        %1455 = vmatpush1.bf16.msra.mxu0 %v1337
        %1456 = vmatprep.subr.bf16.mxu0 %v1340
        %1457 = vmatpush1.bf16.msra.mxu0 %v1339
        %1458 = vmatprep.subr.bf16.mxu0 %v1342
        %1459 = vmatpush1.bf16.msra.mxu0 %v1341
        %1460 = vmatprep.subr.bf16.mxu0 %v1344
        %1461 = vmatpush1.bf16.msra.mxu0 %v1343
        %1462 = vmatprep.subr.bf16.mxu0 %v1346
        %1463 = vmatpush1.bf16.msra.mxu0 %v1345
        %1464 = vmatprep.subr.bf16.mxu0 %v1348
        %1465 = vmatpush1.bf16.msra.mxu0 %v1347
        %1466 = vmatprep.subr.bf16.mxu0 %v1350
        %1467 = vmatpush1.bf16.msra.mxu0 %v1349
        %1468 = vmatprep.subr.bf16.mxu0 0
        %1469 = vmatpush1.bf16.msra.mxu0 0
        %1470 = vmatprep.subr.bf16.mxu0 0
        %1471 = vmatpush1.bf16.msra.mxu0 0
        %1472 = vmatprep.subr.bf16.mxu0 0
        %1473 = vmatpush1.bf16.msra.mxu0 0
        %1474 = vmatprep.subr.bf16.mxu0 0
        %1475 = vmatpush1.bf16.msra.mxu0 0
        %1476 = vmatprep.subr.bf16.mxu0 0
        %1477 = vmatpush1.bf16.msra.mxu0 0
        %1478 = vmatprep.subr.bf16.mxu0 0
        %1479 = vmatpush1.bf16.msra.mxu0 0
        %1480 = vmatprep.subr.bf16.mxu0 0
        %1481 = vmatpush1.bf16.msra.mxu0 0
        %1482 = vmatprep.subr.bf16.mxu0 0
        %1483 = vmatpush1.bf16.msra.mxu0 0
        %1484 = vmatprep.mubr.bf16.mxu0 0
        %1485 = vmatmul.mubr.bf16.gmra.mrb[0].mxu0 %v1146
        %v1486 = vpop.f32.mrb[0].mxu0
        %v1487 = vadd.f32 %v1434, %v1486
        %v1488 = vpop.f32.mrb[0].mxu0
        %v1489 = vadd.f32 %v1436, %v1488
        %v1490 = vpop.f32.mrb[0].mxu0
        %v1491 = vadd.f32 %v1438, %v1490
        %v1492 = vpop.f32.mrb[0].mxu0
        %v1493 = vadd.f32 %v1440, %v1492
        %1494 = vmatprep.mubr.bf16.mxu0 0
        %1495 = vmatmul.mubr.bf16.gmra.mrb[0].mxu0 %v1147
        %v1496 = vpop.f32.mrb[0].mxu0
        %v1497 = vadd.f32 %v1444, %v1496
        %v1498 = vpop.f32.mrb[0].mxu0
        %v1499 = vadd.f32 %v1446, %v1498
        %v1500 = vpop.f32.mrb[0].mxu0
        %v1501 = vadd.f32 %v1448, %v1500
        %v1502 = vpop.f32.mrb[0].mxu0
        %v1503 = vadd.f32 %v1450, %v1502
        %1504 = vdwg.mxu0
        %v1505 = vmul.f32 %v1487, 0.01
        %v1506 = vmul.f32 %v1489, 0.01
        %v1507 = vmul.f32 %v1491, 0.01
        %v1508 = vmul.f32 %v1493, 0.01
        %v1509 = vmul.f32 %v1497, 0.01
        %v1510 = vmul.f32 %v1499, 0.01
        %v1511 = vmul.f32 %v1501, 0.01
        %v1512 = vmul.f32 %v1503, 0.01
        %v1513 = vmax.f32 %v1487, %v1505
        %v1514 = vmax.f32 %v1489, %v1506
        %v1515 = vmax.f32 %v1491, %v1507
        %v1516 = vmax.f32 %v1493, %v1508
        %v1517 = vmax.f32 %v1497, %v1509
        %v1518 = vmax.f32 %v1499, %v1510
        %v1519 = vmax.f32 %v1501, %v1511
        %v1520 = vmax.f32 %v1503, %v1512
        %v1521 = vpack.c.bf16 %v1515, %v1513
        %v1522 = vpack.c.bf16 %v1516, %v1514
        %v1523 = vpack.c.bf16 %v1519, %v1517
        %v1524 = vpack.c.bf16 %v1520, %v1518
        %v1525 = vld [vmem:[%s7] sm:$0xf]
        %v1526 = vld [vmem:[%s7 + $0x4] sm:$0xf]
        %v1527 = vld [vmem:[%s7 + $0x8] sm:$0xf]
        %v1528 = vld [vmem:[%s7 + $0xc] sm:$0xf]
        %v1529 = vld [vmem:[%s7 + $0x10] sm:$0xf]
        %v1530 = vld [vmem:[%s7 + $0x14] sm:$0xf]
        %v1531 = vld [vmem:[%s7 + $0x18] sm:$0xf]
        %v1532 = vld [vmem:[%s7 + $0x1c] sm:$0xf]
        %v1533 = vld [vmem:[%s7 + $0x20] sm:$0xf]
        %v1534 = vld [vmem:[%s7 + $0x24] sm:$0xf]
        %v1535 = vld [vmem:[%s7 + $0x28] sm:$0xf]
        %v1536 = vld [vmem:[%s7 + $0x2c] sm:$0xf]
        %v1537 = vld [vmem:[%s7 + $0x30] sm:$0xf]
        %v1538 = vld [vmem:[%s7 + $0x34] sm:$0xf]
        %v1539 = vld [vmem:[%s7 + $0x38] sm:$0xf]
        %v1540 = vld [vmem:[%s7 + $0x3c] sm:$0xf]
        %v1541 = vld [vmem:[%s7 + $0x40] sm:$0xf]
        %v1542 = vld [vmem:[%s7 + $0x44] sm:$0xf]
        %v1543 = vld [vmem:[%s7 + $0x48] sm:$0xf]
        %v1544 = vld [vmem:[%s7 + $0x4c] sm:$0xf]
        %v1545 = vld [vmem:[%s7 + $0x50] sm:$0xf]
        %v1546 = vld [vmem:[%s7 + $0x54] sm:$0xf]
        %v1547 = vld [vmem:[%s7 + $0x58] sm:$0xf]
        %v1548 = vld [vmem:[%s7 + $0x5c] sm:$0xf]
        %v1549 = vld [vmem:[%s7 + $0x60] sm:$0xf]
        %v1550 = vld [vmem:[%s7 + $0x64] sm:$0xf]
        %v1551 = vld [vmem:[%s7 + $0x68] sm:$0xf]
        %v1552 = vld [vmem:[%s7 + $0x6c] sm:$0xf]
        %v1553 = vld [vmem:[%s7 + $0x70] sm:$0xf]
        %v1554 = vld [vmem:[%s7 + $0x74] sm:$0xf]
        %v1555 = vld [vmem:[%s7 + $0x78] sm:$0xf]
        %v1556 = vld [vmem:[%s7 + $0x7c] sm:$0xf]
        %v1557 = vld [vmem:[%s8] sm:$0x1]
        %v1559 = vlaneseq
        %v1560 = vshrl.u32 %v1559, 7
        %v1561 = vsub.s32 0, %v1560
        %v1562 = vrot.slane %v1557, %v1561
        %v1596 = vunpack.c.l.b16 %v1525
        %v1597 = vunpack.c.l.b16 %v1526
        %v1598 = vunpack.c.l.b16 %v1527
        %v1599 = vunpack.c.l.b16 %v1528
        %v1600 = vunpack.c.l.b16 %v1529
        %v1601 = vunpack.c.l.b16 %v1530
        %v1602 = vunpack.c.l.b16 %v1531
        %v1603 = vunpack.c.l.b16 %v1532
        %v1604 = vunpack.c.l.b16 %v1533
        %v1605 = vunpack.c.l.b16 %v1534
        %v1606 = vunpack.c.l.b16 %v1535
        %v1607 = vunpack.c.l.b16 %v1536
        %v1608 = vunpack.c.l.b16 %v1537
        %v1609 = vunpack.c.l.b16 %v1538
        %v1610 = vunpack.c.l.b16 %v1539
        %v1611 = vunpack.c.l.b16 %v1540
        %v1612 = vunpack.c.l.b16 %v1541
        %v1613 = vunpack.c.l.b16 %v1542
        %v1614 = vunpack.c.l.b16 %v1543
        %v1615 = vunpack.c.l.b16 %v1544
        %v1616 = vunpack.c.l.b16 %v1545
        %v1617 = vunpack.c.l.b16 %v1546
        %v1618 = vunpack.c.l.b16 %v1547
        %v1619 = vunpack.c.l.b16 %v1548
        %v1620 = vunpack.c.l.b16 %v1549
        %v1621 = vunpack.c.l.b16 %v1550
        %v1622 = vunpack.c.l.b16 %v1551
        %v1623 = vunpack.c.l.b16 %v1552
        %v1624 = vunpack.c.l.b16 %v1553
        %v1625 = vunpack.c.l.b16 %v1554
        %v1626 = vunpack.c.l.b16 %v1555
        %v1627 = vunpack.c.l.b16 %v1556
        %v1628 = vpack.c.b16 %v1597, %v1596
        %v1629 = vpack.c.b16 %v1599, %v1598
        %v1630 = vpack.c.b16 %v1601, %v1600
        %v1631 = vpack.c.b16 %v1603, %v1602
        %v1632 = vpack.c.b16 %v1605, %v1604
        %v1633 = vpack.c.b16 %v1607, %v1606
        %v1634 = vpack.c.b16 %v1609, %v1608
        %v1635 = vpack.c.b16 %v1611, %v1610
        %v1636 = vpack.c.b16 %v1613, %v1612
        %v1637 = vpack.c.b16 %v1615, %v1614
        %v1638 = vpack.c.b16 %v1617, %v1616
        %v1639 = vpack.c.b16 %v1619, %v1618
        %v1640 = vpack.c.b16 %v1621, %v1620
        %v1641 = vpack.c.b16 %v1623, %v1622
        %v1642 = vpack.c.b16 %v1625, %v1624
        %v1643 = vpack.c.b16 %v1627, %v1626
        %1660 = vmatprep.subr.bf16.mxu0 0
        %1661 = vmatpush1.bf16.msra.mxu0 %v1628
        %1662 = vmatprep.subr.bf16.mxu0 0
        %1663 = vmatpush1.bf16.msra.mxu0 %v1629
        %1664 = vmatprep.subr.bf16.mxu0 0
        %1665 = vmatpush1.bf16.msra.mxu0 %v1630
        %1666 = vmatprep.subr.bf16.mxu0 0
        %1667 = vmatpush1.bf16.msra.mxu0 %v1631
        %1668 = vmatprep.subr.bf16.mxu0 0
        %1669 = vmatpush1.bf16.msra.mxu0 %v1632
        %1670 = vmatprep.subr.bf16.mxu0 0
        %1671 = vmatpush1.bf16.msra.mxu0 %v1633
        %1672 = vmatprep.subr.bf16.mxu0 0
        %1673 = vmatpush1.bf16.msra.mxu0 %v1634
        %1674 = vmatprep.subr.bf16.mxu0 0
        %1675 = vmatpush1.bf16.msra.mxu0 %v1635
        %1676 = vmatprep.subr.bf16.mxu0 0
        %1677 = vmatpush1.bf16.msra.mxu0 %v1636
        %1678 = vmatprep.subr.bf16.mxu0 0
        %1679 = vmatpush1.bf16.msra.mxu0 %v1637
        %1680 = vmatprep.subr.bf16.mxu0 0
        %1681 = vmatpush1.bf16.msra.mxu0 %v1638
        %1682 = vmatprep.subr.bf16.mxu0 0
        %1683 = vmatpush1.bf16.msra.mxu0 %v1639
        %1684 = vmatprep.subr.bf16.mxu0 0
        %1685 = vmatpush1.bf16.msra.mxu0 %v1640
        %1686 = vmatprep.subr.bf16.mxu0 0
        %1687 = vmatpush1.bf16.msra.mxu0 %v1641
        %1688 = vmatprep.subr.bf16.mxu0 0
        %1689 = vmatpush1.bf16.msra.mxu0 %v1642
        %1690 = vmatprep.subr.bf16.mxu0 0
        %1691 = vmatpush1.bf16.msra.mxu0 %v1643
        %1692 = vmatprep.mubr.bf16.mxu0 %v1522
        %1693 = vmatmul.mubr.bf16.gmra.mrb[0].mxu0 %v1521
        %v1694 = vpop.f32.mrb[0].mxu0
        %v1695 = vadd.f32 %v1562, %v1694
        %v1696 = vpop.f32.mrb[0].mxu0
        %v1697 = vpop.f32.mrb[0].mxu0
        %v1698 = vadd.f32 %v1562, %v1697
        %v1699 = vpop.f32.mrb[0].mxu0
        %1700 = vmatprep.mubr.bf16.mxu0 %v1524
        %1701 = vmatmul.mubr.bf16.gmra.mrb[0].mxu0 %v1523
        %v1702 = vpop.f32.mrb[0].mxu0
        %v1703 = vadd.f32 %v1562, %v1702
        %v1704 = vpop.f32.mrb[0].mxu0
        %v1705 = vpop.f32.mrb[0].mxu0
        %v1706 = vadd.f32 %v1562, %v1705
        %v1707 = vpop.f32.mrb[0].mxu0
        %1708 = vdwg.mxu0
        %vm1709 = vcmask 15360
        %1710 = vst.msk [vmem:[%s349] sm:$0xff] %vm1709, %v1695
        %1711 = vst.msk [vmem:[%s349 + $0x8] sm:$0xff] %vm1709, %v1698
        %1712 = vst.msk [vmem:[%s349 + $0x10] sm:$0xff] %vm1709, %v1703
        %1713 = vst.msk [vmem:[%s349 + $0x18] sm:$0xff] %vm1709, %v1706
        %s1714 = smul.u32 4, %s21
        %p1715 = scmp.lt.s32.totalorder %s1714, 7
        %s1716 = scalar_select %p1715, %s1714, 7
        %s1717 = smul.addr %s1716, 8
        %s1718 = scalar_lea.vmem %s9, %s1717
        // Predicated region
        $region68: #{pitch_predictor_pallas.1} parent=55 // pred_check
          %p1719 = pneg %p233
        $region69: #{pitch_predictor_pallas.1} parent=55 // pred_check_branch
          %1721 = sbr.rel (%p1719) target = $region71
        $region70: #{pitch_predictor_pallas.1} parent=55 // pred_region
          %s1722 = smul.u32 4, %s21
        $region71: #{pitch_predictor_pallas.1} parent=55 // pred_fallthru
          _
      $region56: #{pitch_predictor_pallas.1} parent=5 // pred_fallthru
        _
      %p1723 = scmp.le.s32.totalorder 2, %s16
      // Predicated region
      $region72: #{pitch_predictor_pallas.1} parent=5 // pred_check
        %p1724 = pneg %p1723
      $region73: #{pitch_predictor_pallas.1} parent=5 // pred_check_branch
        %1726 = sbr.rel (%p1724) target = $region75
      $region74: #{pitch_predictor_pallas.1} parent=5 // pred_region
        %s1727 = ssub.s32 %s16, 2
        // Predicated region
        $region76: #{pitch_predictor_pallas.1} parent=74 // pred_check
          %p1728 = pneg %p239
        $region77: #{pitch_predictor_pallas.1} parent=74 // pred_check_branch
          %1730 = sbr.rel (%p1728) target = $region79
        $region78: #{pitch_predictor_pallas.1} parent=74 // pred_region
          %s1731 = smul.u32 4, %s22
          %p1732 = scmp.lt.s32.totalorder %s1731, 7
          %s1733 = scalar_select %p1732, %s1731, 7
          %s1734 = smul.addr %s1733, 8
          %s1735 = scalar_lea.vmem %s9, %s1734
        $region79: #{pitch_predictor_pallas.1} parent=74 // pred_fallthru
          _
      $region75: #{pitch_predictor_pallas.1} parent=5 // pred_fallthru
        _
    $region6: #{pitch_predictor_pallas.1} parent=1 // loop_footer
      %s20 = sadd.s32 1, %s16
    $region7: #{pitch_predictor_pallas.1} parent=1 // loop_footer_branch
      %15 = sbr.rel target = $region3
    $region8: #{pitch_predictor_pallas.1} parent=1 // loop_exit
      _
    %1736 = vsyncpa [#allocation3], 1
    %s1737 = scalar_lea.sflag [#allocation3], 1
    %1738 = vsyncpa %s1737, 1

</llo_original>
